<compile_context>
chip_gen: v5e
topology: v5e:2x2
jax: 0.10.0
libtpu: 0.0.40
codegen_flags: <defaults>
</compile_context>

<pallas_src>
import math
import jax
import jax.numpy as jnp
from jax import lax
from jax.experimental import pallas as pl
from jax.experimental.pallas import tpu as pltpu


def _round_up(x, m):
    return -(-x // m) * m


def _build_call(cin_pad, cout, kh, kw, wp, l, hpwp,
                alpha, alphas, tau_m_dt, tau_s_dt):
    """Build a jitted pallas_call for one spatial geometry.

    x_seq  : [T, N, cin_pad, hpwp]   zero-padded input, spatial flattened
    w2d    : [cout, kh*kw*cin_pad]   (i, j, c)-major flattened weights
    b2d    : [cout, 1]
    eps0/1 : [N, cout, L]            L = hout*wp rounded up to 128 lanes

    grid = (N, T): batch is "parallel" (megacore split on v7x), time is the
    sequential carry axis ("arbitrary", innermost).  The recurrent state is
    carried across T in VMEM scratch (initialized from the state inputs at
    t == 0), so intermediate state never touches HBM.
    """
    kkc = kh * kw * cin_pad

    def kernel(x_ref, w_ref, b_ref, e0i_ref, e1i_ref,      # inputs
               pv_ref, pvm_ref, e0o_ref,                    # outputs
               xcol_ref, e0c_ref, e1c_ref):                 # scratch
        t = pl.program_id(1)

        # Load the incoming recurrent state once per batch element.
        @pl.when(t == 0)
        def _():
            e0c_ref[...] = e0i_ref[0]
            e1c_ref[...] = e1i_ref[0]

        # im2col into VMEM scratch: one lane-shifted [cin_pad, L] slice per
        # tap, then a single deep-K MXU matmul (K = kh*kw*cin_pad).
        for i in range(kh):
            for j in range(kw):
                tap = i * kw + j
                off = i * wp + j
                xcol_ref[tap * cin_pad:(tap + 1) * cin_pad, :] = \
                    x_ref[0, 0, :, off:off + l]

        conv = jnp.dot(w_ref[...], xcol_ref[...],
                       preferred_element_type=jnp.float32) + b_ref[...]

        # Double-exponential synapse / membrane update (f32 VPU, lane-dense).
        eps0 = conv * tau_s_dt + alphas * e0c_ref[...]
        eps1 = alpha * e1c_ref[...] + eps0 * tau_m_dt
        e0c_ref[...] = eps0
        e1c_ref[...] = eps1
        e0o_ref[0] = eps0                       # final eps0 state (per batch)
        pvm_ref[0, 0] = eps1                    # pvmem history == eps1 history
        pv_ref[0, 0] = jax.nn.sigmoid(eps1)     # act = Sigmoid
        # NOTE: lanes >= wout inside each padded row (and the tail lanes that
        # round L up to 128) hold junk conv values; every consumer slices them
        # away in the wrapper before they are observable.

    state_spec = pl.BlockSpec((1, cout, l), lambda b, t: (b, 0, 0))
    seq_spec = pl.BlockSpec((1, 1, cout, l), lambda b, t: (t, b, 0, 0))

    @jax.jit
    def call(x_seq, w2d, b2d, eps0, eps1):
        tsteps, n = x_seq.shape[0], x_seq.shape[1]
        return pl.pallas_call(
            kernel,
            out_shape=(
                jax.ShapeDtypeStruct((tsteps, n, cout, l), jnp.float32),  # pv
                jax.ShapeDtypeStruct((tsteps, n, cout, l), jnp.float32),  # pvmem
                jax.ShapeDtypeStruct((n, cout, l), jnp.float32),          # eps0'
            ),
            grid=(n, tsteps),
            in_specs=[
                pl.BlockSpec((1, 1, cin_pad, hpwp), lambda b, t: (t, b, 0, 0)),
                pl.BlockSpec((cout, kkc), lambda b, t: (0, 0)),
                pl.BlockSpec((cout, 1), lambda b, t: (0, 0)),
                state_spec,    # eps0 in (read at t == 0 only)
                state_spec,    # eps1 in (read at t == 0 only)
            ],
            out_specs=(seq_spec, seq_spec, state_spec),
            scratch_shapes=[
                pltpu.VMEM((kkc, l), jnp.float32),    # im2col tile
                pltpu.VMEM((cout, l), jnp.float32),   # eps0 carry
                pltpu.VMEM((cout, l), jnp.float32),   # eps1 carry
            ],
            compiler_params=pltpu.CompilerParams(
                dimension_semantics=("parallel", "arbitrary")),
        )(x_seq, w2d, b2d, eps0, eps1)

    return call


class ContinuousConv2D:
    def __init__(self, in_channels, out_channels, kernel_size, stride=1,
                 padding=2, dilation=1, groups=1, bias=True,
                 alpha=0.95, alphas=0.9, key=None):
        assert stride == 1 and dilation == 1 and groups == 1, \
            "kernel implements the module defaults (stride=1, dilation=1, groups=1)"
        if isinstance(kernel_size, int):
            kernel_size = (kernel_size, kernel_size)
        self.in_channels = in_channels
        self.out_channels = out_channels
        self.kernel_size = kernel_size
        self.padding = padding
        self.alpha = float(alpha)
        self.alphas = float(alphas)
        self.tau_m_dt = 1.0 / (1.0 - self.alpha)
        self.tau_s_dt = 1.0 / (1.0 - self.alphas)
        self.cin_pad = _round_up(in_channels, 8)     # sublane-aligned im2col rows

        # deterministic parameter init, same distribution as reset_parameters()
        n = in_channels
        for k in kernel_size:
            n *= k
        stdv = 1.0 / math.sqrt(n) / 250.0
        key = jax.random.PRNGKey(0) if key is None else key
        wkey, bkey = jax.random.split(key)
        self.weight = jax.random.uniform(
            wkey, (out_channels, in_channels, *kernel_size),
            minval=-stdv * 0.01, maxval=stdv * 0.01, dtype=jnp.float32)
        self.bias = (jax.random.uniform(
            bkey, (out_channels,), minval=-stdv, maxval=stdv, dtype=jnp.float32)
            if bias else jnp.zeros((out_channels,), jnp.float32))

        # kernel-side weight layout: [cout, (i, j, c) flattened, c padded to 8]
        kh, kw = kernel_size
        w_t = jnp.transpose(self.weight, (0, 2, 3, 1))          # [cout, kh, kw, cin]
        w_t = w_t.reshape(out_channels, kh * kw, in_channels)
        w_t = jnp.pad(w_t, ((0, 0), (0, 0), (0, self.cin_pad - in_channels)))
        self.w2d = w_t.reshape(out_channels, kh * kw * self.cin_pad)
        self.bias2d = self.bias.reshape(out_channels, 1)

        self._cache = {}

    # ---------- geometry ----------
    def get_output_shape(self, im_dims):
        h, w = im_dims
        kh, kw = self.kernel_size
        return (h + 2 * self.padding - kh + 1, w + 2 * self.padding - kw + 1)

    def _geometry(self, h, w):
        kh, kw = self.kernel_size
        p = self.padding
        hout = h + 2 * p - kh + 1
        wout = w + 2 * p - kw + 1
        wp = w + 2 * p                       # padded row stride
        l_rows = hout * wp
        l = _round_up(l_rows, 128)           # lane-dense output width, always
        need = (kh - 1) * wp + (kw - 1) + l  # max flat lane index touched + 1
        hp = max(-(-need // wp), h + 2 * p)  # padded rows so slices stay in bounds
        hpwp = _round_up(hp * wp, 128)       # dense input DMA tile
        return {"hout": hout, "wout": wout, "wp": wp, "hp": hp,
                "l": l, "l_rows": l_rows, "hpwp": hpwp}

    def _get_call(self, h, w):
        key = (h, w)
        if key not in self._cache:
            g = self._geometry(h, w)
            kh, kw = self.kernel_size
            call = _build_call(self.cin_pad, self.out_channels, kh, kw,
                               g["wp"], g["l"], g["hpwp"],
                               self.alpha, self.alphas,
                               self.tau_m_dt, self.tau_s_dt)
            self._cache[key] = (g, call)
        return self._cache[key]

    # ---------- layout helpers ----------
    def _pack_input(self, x5d, g):
        """[T, N, cin, H, W] -> zero-padded flat [T, N, cin_pad, hpwp]."""
        tsteps, n, cin, h, w = x5d.shape
        p = self.padding
        xp = jnp.pad(x5d, ((0, 0), (0, 0), (0, self.cin_pad - cin),
                           (p, g["hp"] - h - p), (p, g["wp"] - w - p)))
        xf = xp.reshape(tsteps, n, self.cin_pad, g["hp"] * g["wp"])
        tail = g["hpwp"] - g["hp"] * g["wp"]
        if tail:
            xf = jnp.pad(xf, ((0, 0), (0, 0), (0, 0), (0, tail)))
        return xf

    def _to_nchw(self, a, g):
        """[..., cout, L] -> [..., cout, hout, wout]  (reshape + slice only)."""
        a = a[..., :g["l_rows"]]
        a = a.reshape(a.shape[:-1] + (g["hout"], g["wp"]))
        return a[..., :g["wout"]]

    # ---------- state ----------
    def init_state(self, batch_size, im_dims, init_value=0.0):
        """State lives in the kernel layout [N, cout, L] across timesteps."""
        g = self._geometry(*im_dims)
        shape = (batch_size, self.out_channels, g["l"])
        return (jnp.full(shape, init_value, jnp.float32),
                jnp.full(shape, init_value, jnp.float32))

    def state_to_nchw(self, state, im_dims):
        g = self._geometry(*im_dims)
        return tuple(self._to_nchw(s, g) for s in state)

    # ---------- forward ----------
    def forward(self, x_nchw, state):
        """One timestep; returns ((output, pv, pvmem), new_state) like the module."""
        (outs, pvs, pvmems), new_state = self.forward_sequence(x_nchw[None], state)
        return (outs[0], pvs[0], pvmems[0]), new_state

    def forward_sequence(self, x_seq, state):
        """Fused-T path: x_seq [T, N, cin, H, W]; one pallas_call for all steps."""
        tsteps, n, cin, h, w = x_seq.shape
        assert cin == self.in_channels
        g, call = self._get_call(h, w)
        xs = self._pack_input(x_seq, g)
        pv_s, pvm_s, eps0_new = call(xs, self.w2d, self.bias2d,
                                     state[0], state[1])
        eps1_new = pvm_s[-1]                       # pvmem == eps1 (dedup output)
        pv = self._to_nchw(pv_s, g)
        pvmem = self._to_nchw(pvm_s, g)
        output = (pvmem > 0).astype(jnp.float32)   # spike threshold fused in wrapper
        return (output, pv, pvmem), (eps0_new, eps1_new)


def _reference_forward(layer, x, state):
    """Plain-JAX reference (mirrors F.conv2d + LIF state update), NCHW state."""
    eps0, eps1 = state
    p = layer.padding
    conv = lax.conv_general_dilated(
        x, layer.weight, window_strides=(1, 1), padding=[(p, p), (p, p)],
        dimension_numbers=("NCHW", "OIHW", "NCHW"),
        precision=lax.Precision.HIGHEST)
    conv = conv + layer.bias[None, :, None, None]
    eps0n = conv * layer.tau_s_dt + layer.alphas * eps0
    eps1n = layer.alpha * eps1 + eps0n * layer.tau_m_dt
    pvmem = eps1n
    pv = jax.nn.sigmoid(pvmem)
    output = (pvmem > 0).astype(jnp.float32)
    return (output, pv, pvmem), (eps0n, eps1n)


if __name__ == "__main__":
    N, CIN, COUT, H, W, K, T = 2, 4, 8, 16, 16, 5, 4   # padding=2 -> same spatial

    root = jax.random.PRNGKey(0)
    layer = ContinuousConv2D(CIN, COUT, K, padding=2, key=root)
    xs = jax.random.normal(jax.random.fold_in(root, 1),
                           (T, N, CIN, H, W), dtype=jnp.float32)

    def close(a, b):
        return bool(jnp.allclose(a, b, rtol=1e-3, atol=1e-5))

    ok = True

    # ---- per-timestep API (module-equivalent), 2 steps of recurrent state ----
    state = layer.init_state(N, (H, W))
    ref_state = (jnp.zeros((N, COUT, H, W), jnp.float32),
                 jnp.zeros((N, COUT, H, W), jnp.float32))
    for t in range(2):
        (out, pv, pvmem), state = layer.forward(xs[t], state)
        (_, rpv, rpvmem), ref_state = _reference_forward(layer, xs[t], ref_state)
        ok &= close(pv, rpv) and close(pvmem, rpvmem)
    jax.block_until_ready((out, pv, pvmem, state))
    st_nchw = layer.state_to_nchw(state, (H, W))
    ok &= close(st_nchw[0], ref_state[0]) and close(st_nchw[1], ref_state[1])
    assert out.shape == (N, COUT, H, W) and pvmem.dtype == jnp.float32

    # ---- fused-T sequence path (single pallas_call for all 4 timesteps) ----
    state = layer.init_state(N, (H, W))
    (outs, pvs, pvmems), state = layer.forward_sequence(xs, state)
    jax.block_until_ready((outs, pvs, pvmems, state))
    ref_state = (jnp.zeros((N, COUT, H, W), jnp.float32),
                 jnp.zeros((N, COUT, H, W), jnp.float32))
    for t in range(T):
        (_, rpv, rpvmem), ref_state = _reference_forward(layer, xs[t], ref_state)
        ok &= close(pvs[t], rpv) and close(pvmems[t], rpvmem)
    st_nchw = layer.state_to_nchw(state, (H, W))
    ok &= close(st_nchw[0], ref_state[0]) and close(st_nchw[1], ref_state[1])
    assert outs.shape == (T, N, COUT, H, W)

    if ok:
        print("KERNEL_OK")
    else:
        raise SystemExit("mismatch vs plain-JAX reference")
</pallas_src>

<mosaic_0001>
module attributes {stable_mosaic.version = 11 : i64} {
  func.func @kernel(%arg0: i32, %arg1: i32, %arg2: memref<1x1x8x512xf32, #tpu.memory_space<vmem>>, %arg3: memref<8x200xf32, #tpu.memory_space<vmem>>, %arg4: memref<8x1xf32, #tpu.memory_space<vmem>>, %arg5: memref<1x8x384xf32, #tpu.memory_space<vmem>>, %arg6: memref<1x8x384xf32, #tpu.memory_space<vmem>>, %arg7: memref<1x1x8x384xf32, #tpu.memory_space<vmem>>, %arg8: memref<1x1x8x384xf32, #tpu.memory_space<vmem>>, %arg9: memref<1x8x384xf32, #tpu.memory_space<vmem>>, %arg10: memref<200x384xf32, #tpu.memory_space<vmem>>, %arg11: memref<8x384xf32, #tpu.memory_space<vmem>>, %arg12: memref<8x384xf32, #tpu.memory_space<vmem>>) attributes {dimension_semantics = [#tpu.dimension_semantics<parallel>, #tpu.dimension_semantics<arbitrary>], iteration_bounds = array<i64: 2, 1>, scalar_prefetch = 0 : i64, scratch_operands = 3 : i64, tpu.core_type = #tpu.core_type<tc>, window_params = [{transform_indices = @transform_0, window_bounds = array<i64: 1, 1, 8, 512>}, {pipeline_mode = #tpu.pipeline_mode<synchronous>, transform_indices = @transform_1, window_bounds = array<i64: 8, 200>}, {pipeline_mode = #tpu.pipeline_mode<synchronous>, transform_indices = @transform_2, window_bounds = array<i64: 8, 1>}, {transform_indices = @transform_3, window_bounds = array<i64: 1, 8, 384>}, {transform_indices = @transform_4, window_bounds = array<i64: 1, 8, 384>}, {transform_indices = @transform_5, window_bounds = array<i64: 1, 1, 8, 384>}, {transform_indices = @transform_6, window_bounds = array<i64: 1, 1, 8, 384>}, {transform_indices = @transform_7, window_bounds = array<i64: 1, 8, 384>}]} {
    %c0_i32 = arith.constant 0 : i32
    %0 = arith.cmpi eq, %arg1, %c0_i32 : i32
    %1 = arith.extui %0 : i1 to i32
    %c0_i32_0 = arith.constant 0 : i32
    %2 = arith.cmpi ne, %1, %c0_i32_0 : i32
    scf.if %2 {
      %c0_136 = arith.constant 0 : index
      %c0_137 = arith.constant 0 : index
      %c0_138 = arith.constant 0 : index
      %112 = vector.load %arg5[%c0_136, %c0_137, %c0_138] : memref<1x8x384xf32, #tpu.memory_space<vmem>>, vector<1x8x384xf32>
      %113 = vector.shape_cast %112 : vector<1x8x384xf32> to vector<8x384xf32>
      %c0_139 = arith.constant 0 : index
      %c0_140 = arith.constant 0 : index
      %114 = vector.load %arg11[%c0_139, %c0_140] : memref<8x384xf32, #tpu.memory_space<vmem>>, vector<8x384xf32>
      tpu.vector_store %arg11[%c0_139, %c0_140], %113 {strides = array<i32>} : memref<8x384xf32, #tpu.memory_space<vmem>>, vector<8x384xf32>,
      %c0_141 = arith.constant 0 : index
      %c0_142 = arith.constant 0 : index
      %c0_143 = arith.constant 0 : index
      %115 = vector.load %arg6[%c0_141, %c0_142, %c0_143] : memref<1x8x384xf32, #tpu.memory_space<vmem>>, vector<1x8x384xf32>
      %116 = vector.shape_cast %115 : vector<1x8x384xf32> to vector<8x384xf32>
      %c0_144 = arith.constant 0 : index
      %c0_145 = arith.constant 0 : index
      %117 = vector.load %arg12[%c0_144, %c0_145] : memref<8x384xf32, #tpu.memory_space<vmem>>, vector<8x384xf32>
      tpu.vector_store %arg12[%c0_144, %c0_145], %116 {strides = array<i32>} : memref<8x384xf32, #tpu.memory_space<vmem>>, vector<8x384xf32>,
    } else {
    }
    %c0 = arith.constant 0 : index
    %c0_1 = arith.constant 0 : index
    %c0_2 = arith.constant 0 : index
    %c0_3 = arith.constant 0 : index
    %3 = vector.load %arg2[%c0, %c0_1, %c0_2, %c0_3] : memref<1x1x8x512xf32, #tpu.memory_space<vmem>>, vector<1x1x8x384xf32>
    %4 = vector.shape_cast %3 : vector<1x1x8x384xf32> to vector<8x384xf32>
    %c0_4 = arith.constant 0 : index
    %c0_5 = arith.constant 0 : index
    %5 = vector.load %arg10[%c0_4, %c0_5] : memref<200x384xf32, #tpu.memory_space<vmem>>, vector<8x384xf32>
    tpu.vector_store %arg10[%c0_4, %c0_5], %4 {strides = array<i32>} : memref<200x384xf32, #tpu.memory_space<vmem>>, vector<8x384xf32>,
    %c0_6 = arith.constant 0 : index
    %c0_7 = arith.constant 0 : index
    %c0_8 = arith.constant 0 : index
    %c1 = arith.constant 1 : index
    %6 = vector.load %arg2[%c0_6, %c0_7, %c0_8, %c1] : memref<1x1x8x512xf32, #tpu.memory_space<vmem>>, vector<1x1x8x384xf32>
    %7 = vector.shape_cast %6 : vector<1x1x8x384xf32> to vector<8x384xf32>
    %c8 = arith.constant 8 : index
    %c0_9 = arith.constant 0 : index
    %8 = vector.load %arg10[%c8, %c0_9] : memref<200x384xf32, #tpu.memory_space<vmem>>, vector<8x384xf32>
    tpu.vector_store %arg10[%c8, %c0_9], %7 {strides = array<i32>} : memref<200x384xf32, #tpu.memory_space<vmem>>, vector<8x384xf32>,
    %c0_10 = arith.constant 0 : index
    %c0_11 = arith.constant 0 : index
    %c0_12 = arith.constant 0 : index
    %c2 = arith.constant 2 : index
    %9 = vector.load %arg2[%c0_10, %c0_11, %c0_12, %c2] : memref<1x1x8x512xf32, #tpu.memory_space<vmem>>, vector<1x1x8x384xf32>
    %10 = vector.shape_cast %9 : vector<1x1x8x384xf32> to vector<8x384xf32>
    %c16 = arith.constant 16 : index
    %c0_13 = arith.constant 0 : index
    %11 = vector.load %arg10[%c16, %c0_13] : memref<200x384xf32, #tpu.memory_space<vmem>>, vector<8x384xf32>
    tpu.vector_store %arg10[%c16, %c0_13], %10 {strides = array<i32>} : memref<200x384xf32, #tpu.memory_space<vmem>>, vector<8x384xf32>,
    %c0_14 = arith.constant 0 : index
    %c0_15 = arith.constant 0 : index
    %c0_16 = arith.constant 0 : index
    %c3 = arith.constant 3 : index
    %12 = vector.load %arg2[%c0_14, %c0_15, %c0_16, %c3] : memref<1x1x8x512xf32, #tpu.memory_space<vmem>>, vector<1x1x8x384xf32>
    %13 = vector.shape_cast %12 : vector<1x1x8x384xf32> to vector<8x384xf32>
    %c24 = arith.constant 24 : index
    %c0_17 = arith.constant 0 : index
    %14 = vector.load %arg10[%c24, %c0_17] : memref<200x384xf32, #tpu.memory_space<vmem>>, vector<8x384xf32>
    tpu.vector_store %arg10[%c24, %c0_17], %13 {strides = array<i32>} : memref<200x384xf32, #tpu.memory_space<vmem>>, vector<8x384xf32>,
    %c0_18 = arith.constant 0 : index
    %c0_19 = arith.constant 0 : index
    %c0_20 = arith.constant 0 : index
    %c4 = arith.constant 4 : index
    %15 = vector.load %arg2[%c0_18, %c0_19, %c0_20, %c4] : memref<1x1x8x512xf32, #tpu.memory_space<vmem>>, vector<1x1x8x384xf32>
    %16 = vector.shape_cast %15 : vector<1x1x8x384xf32> to vector<8x384xf32>
    %c32 = arith.constant 32 : index
    %c0_21 = arith.constant 0 : index
    %17 = vector.load %arg10[%c32, %c0_21] : memref<200x384xf32, #tpu.memory_space<vmem>>, vector<8x384xf32>
    tpu.vector_store %arg10[%c32, %c0_21], %16 {strides = array<i32>} : memref<200x384xf32, #tpu.memory_space<vmem>>, vector<8x384xf32>,
    %c0_22 = arith.constant 0 : index
    %c0_23 = arith.constant 0 : index
    %c0_24 = arith.constant 0 : index
    %c20 = arith.constant 20 : index
    %18 = vector.load %arg2[%c0_22, %c0_23, %c0_24, %c20] : memref<1x1x8x512xf32, #tpu.memory_space<vmem>>, vector<1x1x8x384xf32>
    %19 = vector.shape_cast %18 : vector<1x1x8x384xf32> to vector<8x384xf32>
    %c40 = arith.constant 40 : index
    %c0_25 = arith.constant 0 : index
    %20 = vector.load %arg10[%c40, %c0_25] : memref<200x384xf32, #tpu.memory_space<vmem>>, vector<8x384xf32>
    tpu.vector_store %arg10[%c40, %c0_25], %19 {strides = array<i32>} : memref<200x384xf32, #tpu.memory_space<vmem>>, vector<8x384xf32>,
    %c0_26 = arith.constant 0 : index
    %c0_27 = arith.constant 0 : index
    %c0_28 = arith.constant 0 : index
    %c21 = arith.constant 21 : index
    %21 = vector.load %arg2[%c0_26, %c0_27, %c0_28, %c21] : memref<1x1x8x512xf32, #tpu.memory_space<vmem>>, vector<1x1x8x384xf32>
    %22 = vector.shape_cast %21 : vector<1x1x8x384xf32> to vector<8x384xf32>
    %c48 = arith.constant 48 : index
    %c0_29 = arith.constant 0 : index
    %23 = vector.load %arg10[%c48, %c0_29] : memref<200x384xf32, #tpu.memory_space<vmem>>, vector<8x384xf32>
    tpu.vector_store %arg10[%c48, %c0_29], %22 {strides = array<i32>} : memref<200x384xf32, #tpu.memory_space<vmem>>, vector<8x384xf32>,
    %c0_30 = arith.constant 0 : index
    %c0_31 = arith.constant 0 : index
    %c0_32 = arith.constant 0 : index
    %c22 = arith.constant 22 : index
    %24 = vector.load %arg2[%c0_30, %c0_31, %c0_32, %c22] : memref<1x1x8x512xf32, #tpu.memory_space<vmem>>, vector<1x1x8x384xf32>
    %25 = vector.shape_cast %24 : vector<1x1x8x384xf32> to vector<8x384xf32>
    %c56 = arith.constant 56 : index
    %c0_33 = arith.constant 0 : index
    %26 = vector.load %arg10[%c56, %c0_33] : memref<200x384xf32, #tpu.memory_space<vmem>>, vector<8x384xf32>
    tpu.vector_store %arg10[%c56, %c0_33], %25 {strides = array<i32>} : memref<200x384xf32, #tpu.memory_space<vmem>>, vector<8x384xf32>,
    %c0_34 = arith.constant 0 : index
    %c0_35 = arith.constant 0 : index
    %c0_36 = arith.constant 0 : index
    %c23 = arith.constant 23 : index
    %27 = vector.load %arg2[%c0_34, %c0_35, %c0_36, %c23] : memref<1x1x8x512xf32, #tpu.memory_space<vmem>>, vector<1x1x8x384xf32>
    %28 = vector.shape_cast %27 : vector<1x1x8x384xf32> to vector<8x384xf32>
    %c64 = arith.constant 64 : index
    %c0_37 = arith.constant 0 : index
    %29 = vector.load %arg10[%c64, %c0_37] : memref<200x384xf32, #tpu.memory_space<vmem>>, vector<8x384xf32>
    tpu.vector_store %arg10[%c64, %c0_37], %28 {strides = array<i32>} : memref<200x384xf32, #tpu.memory_space<vmem>>, vector<8x384xf32>,
    %c0_38 = arith.constant 0 : index
    %c0_39 = arith.constant 0 : index
    %c0_40 = arith.constant 0 : index
    %c24_41 = arith.constant 24 : index
    %30 = vector.load %arg2[%c0_38, %c0_39, %c0_40, %c24_41] : memref<1x1x8x512xf32, #tpu.memory_space<vmem>>, vector<1x1x8x384xf32>
    %31 = vector.shape_cast %30 : vector<1x1x8x384xf32> to vector<8x384xf32>
    %c72 = arith.constant 72 : index
    %c0_42 = arith.constant 0 : index
    %32 = vector.load %arg10[%c72, %c0_42] : memref<200x384xf32, #tpu.memory_space<vmem>>, vector<8x384xf32>
    tpu.vector_store %arg10[%c72, %c0_42], %31 {strides = array<i32>} : memref<200x384xf32, #tpu.memory_space<vmem>>, vector<8x384xf32>,
    %c0_43 = arith.constant 0 : index
    %c0_44 = arith.constant 0 : index
    %c0_45 = arith.constant 0 : index
    %c40_46 = arith.constant 40 : index
    %33 = vector.load %arg2[%c0_43, %c0_44, %c0_45, %c40_46] : memref<1x1x8x512xf32, #tpu.memory_space<vmem>>, vector<1x1x8x384xf32>
    %34 = vector.shape_cast %33 : vector<1x1x8x384xf32> to vector<8x384xf32>
    %c80 = arith.constant 80 : index
    %c0_47 = arith.constant 0 : index
    %35 = vector.load %arg10[%c80, %c0_47] : memref<200x384xf32, #tpu.memory_space<vmem>>, vector<8x384xf32>
    tpu.vector_store %arg10[%c80, %c0_47], %34 {strides = array<i32>} : memref<200x384xf32, #tpu.memory_space<vmem>>, vector<8x384xf32>,
    %c0_48 = arith.constant 0 : index
    %c0_49 = arith.constant 0 : index
    %c0_50 = arith.constant 0 : index
    %c41 = arith.constant 41 : index
    %36 = vector.load %arg2[%c0_48, %c0_49, %c0_50, %c41] : memref<1x1x8x512xf32, #tpu.memory_space<vmem>>, vector<1x1x8x384xf32>
    %37 = vector.shape_cast %36 : vector<1x1x8x384xf32> to vector<8x384xf32>
    %c88 = arith.constant 88 : index
    %c0_51 = arith.constant 0 : index
    %38 = vector.load %arg10[%c88, %c0_51] : memref<200x384xf32, #tpu.memory_space<vmem>>, vector<8x384xf32>
    tpu.vector_store %arg10[%c88, %c0_51], %37 {strides = array<i32>} : memref<200x384xf32, #tpu.memory_space<vmem>>, vector<8x384xf32>,
    %c0_52 = arith.constant 0 : index
    %c0_53 = arith.constant 0 : index
    %c0_54 = arith.constant 0 : index
    %c42 = arith.constant 42 : index
    %39 = vector.load %arg2[%c0_52, %c0_53, %c0_54, %c42] : memref<1x1x8x512xf32, #tpu.memory_space<vmem>>, vector<1x1x8x384xf32>
    %40 = vector.shape_cast %39 : vector<1x1x8x384xf32> to vector<8x384xf32>
    %c96 = arith.constant 96 : index
    %c0_55 = arith.constant 0 : index
    %41 = vector.load %arg10[%c96, %c0_55] : memref<200x384xf32, #tpu.memory_space<vmem>>, vector<8x384xf32>
    tpu.vector_store %arg10[%c96, %c0_55], %40 {strides = array<i32>} : memref<200x384xf32, #tpu.memory_space<vmem>>, vector<8x384xf32>,
    %c0_56 = arith.constant 0 : index
    %c0_57 = arith.constant 0 : index
    %c0_58 = arith.constant 0 : index
    %c43 = arith.constant 43 : index
    %42 = vector.load %arg2[%c0_56, %c0_57, %c0_58, %c43] : memref<1x1x8x512xf32, #tpu.memory_space<vmem>>, vector<1x1x8x384xf32>
    %43 = vector.shape_cast %42 : vector<1x1x8x384xf32> to vector<8x384xf32>
    %c104 = arith.constant 104 : index
    %c0_59 = arith.constant 0 : index
    %44 = vector.load %arg10[%c104, %c0_59] : memref<200x384xf32, #tpu.memory_space<vmem>>, vector<8x384xf32>
    tpu.vector_store %arg10[%c104, %c0_59], %43 {strides = array<i32>} : memref<200x384xf32, #tpu.memory_space<vmem>>, vector<8x384xf32>,
    %c0_60 = arith.constant 0 : index
    %c0_61 = arith.constant 0 : index
    %c0_62 = arith.constant 0 : index
    %c44 = arith.constant 44 : index
    %45 = vector.load %arg2[%c0_60, %c0_61, %c0_62, %c44] : memref<1x1x8x512xf32, #tpu.memory_space<vmem>>, vector<1x1x8x384xf32>
    %46 = vector.shape_cast %45 : vector<1x1x8x384xf32> to vector<8x384xf32>
    %c112 = arith.constant 112 : index
    %c0_63 = arith.constant 0 : index
    %47 = vector.load %arg10[%c112, %c0_63] : memref<200x384xf32, #tpu.memory_space<vmem>>, vector<8x384xf32>
    tpu.vector_store %arg10[%c112, %c0_63], %46 {strides = array<i32>} : memref<200x384xf32, #tpu.memory_space<vmem>>, vector<8x384xf32>,
    %c0_64 = arith.constant 0 : index
    %c0_65 = arith.constant 0 : index
    %c0_66 = arith.constant 0 : index
    %c60 = arith.constant 60 : index
    %48 = vector.load %arg2[%c0_64, %c0_65, %c0_66, %c60] : memref<1x1x8x512xf32, #tpu.memory_space<vmem>>, vector<1x1x8x384xf32>
    %49 = vector.shape_cast %48 : vector<1x1x8x384xf32> to vector<8x384xf32>
    %c120 = arith.constant 120 : index
    %c0_67 = arith.constant 0 : index
    %50 = vector.load %arg10[%c120, %c0_67] : memref<200x384xf32, #tpu.memory_space<vmem>>, vector<8x384xf32>
    tpu.vector_store %arg10[%c120, %c0_67], %49 {strides = array<i32>} : memref<200x384xf32, #tpu.memory_space<vmem>>, vector<8x384xf32>,
    %c0_68 = arith.constant 0 : index
    %c0_69 = arith.constant 0 : index
    %c0_70 = arith.constant 0 : index
    %c61 = arith.constant 61 : index
    %51 = vector.load %arg2[%c0_68, %c0_69, %c0_70, %c61] : memref<1x1x8x512xf32, #tpu.memory_space<vmem>>, vector<1x1x8x384xf32>
    %52 = vector.shape_cast %51 : vector<1x1x8x384xf32> to vector<8x384xf32>
    %c128 = arith.constant 128 : index
    %c0_71 = arith.constant 0 : index
    %53 = vector.load %arg10[%c128, %c0_71] : memref<200x384xf32, #tpu.memory_space<vmem>>, vector<8x384xf32>
    tpu.vector_store %arg10[%c128, %c0_71], %52 {strides = array<i32>} : memref<200x384xf32, #tpu.memory_space<vmem>>, vector<8x384xf32>,
    %c0_72 = arith.constant 0 : index
    %c0_73 = arith.constant 0 : index
    %c0_74 = arith.constant 0 : index
    %c62 = arith.constant 62 : index
    %54 = vector.load %arg2[%c0_72, %c0_73, %c0_74, %c62] : memref<1x1x8x512xf32, #tpu.memory_space<vmem>>, vector<1x1x8x384xf32>
    %55 = vector.shape_cast %54 : vector<1x1x8x384xf32> to vector<8x384xf32>
    %c136 = arith.constant 136 : index
    %c0_75 = arith.constant 0 : index
    %56 = vector.load %arg10[%c136, %c0_75] : memref<200x384xf32, #tpu.memory_space<vmem>>, vector<8x384xf32>
    tpu.vector_store %arg10[%c136, %c0_75], %55 {strides = array<i32>} : memref<200x384xf32, #tpu.memory_space<vmem>>, vector<8x384xf32>,
    %c0_76 = arith.constant 0 : index
    %c0_77 = arith.constant 0 : index
    %c0_78 = arith.constant 0 : index
    %c63 = arith.constant 63 : index
    %57 = vector.load %arg2[%c0_76, %c0_77, %c0_78, %c63] : memref<1x1x8x512xf32, #tpu.memory_space<vmem>>, vector<1x1x8x384xf32>
    %58 = vector.shape_cast %57 : vector<1x1x8x384xf32> to vector<8x384xf32>
    %c144 = arith.constant 144 : index
    %c0_79 = arith.constant 0 : index
    %59 = vector.load %arg10[%c144, %c0_79] : memref<200x384xf32, #tpu.memory_space<vmem>>, vector<8x384xf32>
    tpu.vector_store %arg10[%c144, %c0_79], %58 {strides = array<i32>} : memref<200x384xf32, #tpu.memory_space<vmem>>, vector<8x384xf32>,
    %c0_80 = arith.constant 0 : index
    %c0_81 = arith.constant 0 : index
    %c0_82 = arith.constant 0 : index
    %c64_83 = arith.constant 64 : index
    %60 = vector.load %arg2[%c0_80, %c0_81, %c0_82, %c64_83] : memref<1x1x8x512xf32, #tpu.memory_space<vmem>>, vector<1x1x8x384xf32>
    %61 = vector.shape_cast %60 : vector<1x1x8x384xf32> to vector<8x384xf32>
    %c152 = arith.constant 152 : index
    %c0_84 = arith.constant 0 : index
    %62 = vector.load %arg10[%c152, %c0_84] : memref<200x384xf32, #tpu.memory_space<vmem>>, vector<8x384xf32>
    tpu.vector_store %arg10[%c152, %c0_84], %61 {strides = array<i32>} : memref<200x384xf32, #tpu.memory_space<vmem>>, vector<8x384xf32>,
    %c0_85 = arith.constant 0 : index
    %c0_86 = arith.constant 0 : index
    %c0_87 = arith.constant 0 : index
    %c80_88 = arith.constant 80 : index
    %63 = vector.load %arg2[%c0_85, %c0_86, %c0_87, %c80_88] : memref<1x1x8x512xf32, #tpu.memory_space<vmem>>, vector<1x1x8x384xf32>
    %64 = vector.shape_cast %63 : vector<1x1x8x384xf32> to vector<8x384xf32>
    %c160 = arith.constant 160 : index
    %c0_89 = arith.constant 0 : index
    %65 = vector.load %arg10[%c160, %c0_89] : memref<200x384xf32, #tpu.memory_space<vmem>>, vector<8x384xf32>
    tpu.vector_store %arg10[%c160, %c0_89], %64 {strides = array<i32>} : memref<200x384xf32, #tpu.memory_space<vmem>>, vector<8x384xf32>,
    %c0_90 = arith.constant 0 : index
    %c0_91 = arith.constant 0 : index
    %c0_92 = arith.constant 0 : index
    %c81 = arith.constant 81 : index
    %66 = vector.load %arg2[%c0_90, %c0_91, %c0_92, %c81] : memref<1x1x8x512xf32, #tpu.memory_space<vmem>>, vector<1x1x8x384xf32>
    %67 = vector.shape_cast %66 : vector<1x1x8x384xf32> to vector<8x384xf32>
    %c168 = arith.constant 168 : index
    %c0_93 = arith.constant 0 : index
    %68 = vector.load %arg10[%c168, %c0_93] : memref<200x384xf32, #tpu.memory_space<vmem>>, vector<8x384xf32>
    tpu.vector_store %arg10[%c168, %c0_93], %67 {strides = array<i32>} : memref<200x384xf32, #tpu.memory_space<vmem>>, vector<8x384xf32>,
    %c0_94 = arith.constant 0 : index
    %c0_95 = arith.constant 0 : index
    %c0_96 = arith.constant 0 : index
    %c82 = arith.constant 82 : index
    %69 = vector.load %arg2[%c0_94, %c0_95, %c0_96, %c82] : memref<1x1x8x512xf32, #tpu.memory_space<vmem>>, vector<1x1x8x384xf32>
    %70 = vector.shape_cast %69 : vector<1x1x8x384xf32> to vector<8x384xf32>
    %c176 = arith.constant 176 : index
    %c0_97 = arith.constant 0 : index
    %71 = vector.load %arg10[%c176, %c0_97] : memref<200x384xf32, #tpu.memory_space<vmem>>, vector<8x384xf32>
    tpu.vector_store %arg10[%c176, %c0_97], %70 {strides = array<i32>} : memref<200x384xf32, #tpu.memory_space<vmem>>, vector<8x384xf32>,
    %c0_98 = arith.constant 0 : index
    %c0_99 = arith.constant 0 : index
    %c0_100 = arith.constant 0 : index
    %c83 = arith.constant 83 : index
    %72 = vector.load %arg2[%c0_98, %c0_99, %c0_100, %c83] : memref<1x1x8x512xf32, #tpu.memory_space<vmem>>, vector<1x1x8x384xf32>
    %73 = vector.shape_cast %72 : vector<1x1x8x384xf32> to vector<8x384xf32>
    %c184 = arith.constant 184 : index
    %c0_101 = arith.constant 0 : index
    %74 = vector.load %arg10[%c184, %c0_101] : memref<200x384xf32, #tpu.memory_space<vmem>>, vector<8x384xf32>
    tpu.vector_store %arg10[%c184, %c0_101], %73 {strides = array<i32>} : memref<200x384xf32, #tpu.memory_space<vmem>>, vector<8x384xf32>,
    %c0_102 = arith.constant 0 : index
    %c0_103 = arith.constant 0 : index
    %c0_104 = arith.constant 0 : index
    %c84 = arith.constant 84 : index
    %75 = vector.load %arg2[%c0_102, %c0_103, %c0_104, %c84] : memref<1x1x8x512xf32, #tpu.memory_space<vmem>>, vector<1x1x8x384xf32>
    %76 = vector.shape_cast %75 : vector<1x1x8x384xf32> to vector<8x384xf32>
    %c192 = arith.constant 192 : index
    %c0_105 = arith.constant 0 : index
    %77 = vector.load %arg10[%c192, %c0_105] : memref<200x384xf32, #tpu.memory_space<vmem>>, vector<8x384xf32>
    tpu.vector_store %arg10[%c192, %c0_105], %76 {strides = array<i32>} : memref<200x384xf32, #tpu.memory_space<vmem>>, vector<8x384xf32>,
    %c0_106 = arith.constant 0 : index
    %c0_107 = arith.constant 0 : index
    %78 = vector.load %arg3[%c0_106, %c0_107] : memref<8x200xf32, #tpu.memory_space<vmem>>, vector<8x200xf32>
    %c0_108 = arith.constant 0 : index
    %c0_109 = arith.constant 0 : index
    %79 = vector.load %arg10[%c0_108, %c0_109] : memref<200x384xf32, #tpu.memory_space<vmem>>, vector<200x384xf32>
    %cst = arith.constant dense<0.000000e+00> : vector<8x384xf32>
    %80 = tpu.matmul %78, %79, %cst {dimension_numbers = #tpu.dot_dimension_numbers<[1], [0], [0], [1], [0, 0, 1, 1], [], []>} : vector<8x200xf32>, vector<200x384xf32>, vector<8x384xf32> -> vector<8x384xf32>
    %c0_110 = arith.constant 0 : index
    %c0_111 = arith.constant 0 : index
    %81 = vector.load %arg4[%c0_110, %c0_111] : memref<8x1xf32, #tpu.memory_space<vmem>>, vector<8x1xf32>
    %82 = vector.broadcast %81 : vector<8x1xf32> to vector<8x384xf32>
    %83 = arith.addf %80, %82 : vector<8x384xf32>
    %cst_112 = arith.constant 1.000000e+01 : f32
    %84 = vector.broadcast %cst_112 : f32 to vector<8x384xf32>
    %85 = arith.mulf %83, %84 : vector<8x384xf32>
    %c0_113 = arith.constant 0 : index
    %c0_114 = arith.constant 0 : index
    %86 = vector.load %arg11[%c0_113, %c0_114] : memref<8x384xf32, #tpu.memory_space<vmem>>, vector<8x384xf32>
    %cst_115 = arith.constant 0.899999976 : f32
    %87 = vector.broadcast %cst_115 : f32 to vector<8x384xf32>
    %88 = arith.mulf %87, %86 : vector<8x384xf32>
    %89 = arith.addf %85, %88 : vector<8x384xf32>
    %c0_116 = arith.constant 0 : index
    %c0_117 = arith.constant 0 : index
    %90 = vector.load %arg12[%c0_116, %c0_117] : memref<8x384xf32, #tpu.memory_space<vmem>>, vector<8x384xf32>
    %cst_118 = arith.constant 0.949999988 : f32
    %91 = vector.broadcast %cst_118 : f32 to vector<8x384xf32>
    %92 = arith.mulf %91, %90 : vector<8x384xf32>
    %cst_119 = arith.constant 2.000000e+01 : f32
    %93 = vector.broadcast %cst_119 : f32 to vector<8x384xf32>
    %94 = arith.mulf %89, %93 : vector<8x384xf32>
    %95 = arith.addf %92, %94 : vector<8x384xf32>
    %c0_120 = arith.constant 0 : index
    %c0_121 = arith.constant 0 : index
    %96 = vector.load %arg11[%c0_120, %c0_121] : memref<8x384xf32, #tpu.memory_space<vmem>>, vector<8x384xf32>
    tpu.vector_store %arg11[%c0_120, %c0_121], %89 {strides = array<i32>} : memref<8x384xf32, #tpu.memory_space<vmem>>, vector<8x384xf32>,
    %c0_122 = arith.constant 0 : index
    %c0_123 = arith.constant 0 : index
    %97 = vector.load %arg12[%c0_122, %c0_123] : memref<8x384xf32, #tpu.memory_space<vmem>>, vector<8x384xf32>
    tpu.vector_store %arg12[%c0_122, %c0_123], %95 {strides = array<i32>} : memref<8x384xf32, #tpu.memory_space<vmem>>, vector<8x384xf32>,
    %c0_124 = arith.constant 0 : index
    %c0_125 = arith.constant 0 : index
    %c0_126 = arith.constant 0 : index
    %98 = vector.load %arg9[%c0_124, %c0_125, %c0_126] : memref<1x8x384xf32, #tpu.memory_space<vmem>>, vector<1x8x384xf32>
    %99 = vector.shape_cast %98 : vector<1x8x384xf32> to vector<8x384xf32>
    %100 = vector.shape_cast %89 : vector<8x384xf32> to vector<1x8x384xf32>
    tpu.vector_store %arg9[%c0_124, %c0_125, %c0_126], %100 {strides = array<i32>} : memref<1x8x384xf32, #tpu.memory_space<vmem>>, vector<1x8x384xf32>,
    %c0_127 = arith.constant 0 : index
    %c0_128 = arith.constant 0 : index
    %c0_129 = arith.constant 0 : index
    %c0_130 = arith.constant 0 : index
    %101 = vector.load %arg8[%c0_127, %c0_128, %c0_129, %c0_130] : memref<1x1x8x384xf32, #tpu.memory_space<vmem>>, vector<1x1x8x384xf32>
    %102 = vector.shape_cast %101 : vector<1x1x8x384xf32> to vector<8x384xf32>
    %103 = vector.shape_cast %95 : vector<8x384xf32> to vector<1x1x8x384xf32>
    tpu.vector_store %arg8[%c0_127, %c0_128, %c0_129, %c0_130], %103 {strides = array<i32>} : memref<1x1x8x384xf32, #tpu.memory_space<vmem>>, vector<1x1x8x384xf32>,
    %104 = arith.negf %95 : vector<8x384xf32>
    %105 = math.exp %104 : vector<8x384xf32>
    %cst_131 = arith.constant 1.000000e+00 : f32
    %106 = vector.broadcast %cst_131 : f32 to vector<8x384xf32>
    %107 = arith.addf %106, %105 : vector<8x384xf32>
    %108 = arith.divf %106, %107 : vector<8x384xf32>
    %c0_132 = arith.constant 0 : index
    %c0_133 = arith.constant 0 : index
    %c0_134 = arith.constant 0 : index
    %c0_135 = arith.constant 0 : index
    %109 = vector.load %arg7[%c0_132, %c0_133, %c0_134, %c0_135] : memref<1x1x8x384xf32, #tpu.memory_space<vmem>>, vector<1x1x8x384xf32>
    %110 = vector.shape_cast %109 : vector<1x1x8x384xf32> to vector<8x384xf32>
    %111 = vector.shape_cast %108 : vector<8x384xf32> to vector<1x1x8x384xf32>
    tpu.vector_store %arg7[%c0_132, %c0_133, %c0_134, %c0_135], %111 {strides = array<i32>} : memref<1x1x8x384xf32, #tpu.memory_space<vmem>>, vector<1x1x8x384xf32>,
    return
  }
  func.func @transform_0(%arg0: i32, %arg1: i32) -> (i32, i32, i32, i32) {
    %c0_i32 = arith.constant 0 : i32
    %c0_i32_0 = arith.constant 0 : i32
    %c0_i32_1 = arith.constant 0 : i32
    return %arg1, %arg0, %c0_i32, %c0_i32_0 : i32, i32, i32, i32
  }
  func.func @transform_1(%arg0: i32, %arg1: i32) -> (i32, i32) {
    %c0_i32 = arith.constant 0 : i32
    %c0_i32_0 = arith.constant 0 : i32
    %c0_i32_1 = arith.constant 0 : i32
    return %c0_i32, %c0_i32_0 : i32, i32
  }
  func.func @transform_2(%arg0: i32, %arg1: i32) -> (i32, i32) {
    %c0_i32 = arith.constant 0 : i32
    %c0_i32_0 = arith.constant 0 : i32
    %c0_i32_1 = arith.constant 0 : i32
    return %c0_i32, %c0_i32_0 : i32, i32
  }
  func.func @transform_3(%arg0: i32, %arg1: i32) -> (i32, i32, i32) {
    %c0_i32 = arith.constant 0 : i32
    %c0_i32_0 = arith.constant 0 : i32
    %c0_i32_1 = arith.constant 0 : i32
    return %arg0, %c0_i32, %c0_i32_0 : i32, i32, i32
  }
  func.func @transform_4(%arg0: i32, %arg1: i32) -> (i32, i32, i32) {
    %c0_i32 = arith.constant 0 : i32
    %c0_i32_0 = arith.constant 0 : i32
    %c0_i32_1 = arith.constant 0 : i32
    return %arg0, %c0_i32, %c0_i32_0 : i32, i32, i32
  }
  func.func @transform_5(%arg0: i32, %arg1: i32) -> (i32, i32, i32, i32) {
    %c0_i32 = arith.constant 0 : i32
    %c0_i32_0 = arith.constant 0 : i32
    %c0_i32_1 = arith.constant 0 : i32
    return %arg1, %arg0, %c0_i32, %c0_i32_0 : i32, i32, i32, i32
  }
  func.func @transform_6(%arg0: i32, %arg1: i32) -> (i32, i32, i32, i32) {
    %c0_i32 = arith.constant 0 : i32
    %c0_i32_0 = arith.constant 0 : i32
    %c0_i32_1 = arith.constant 0 : i32
    return %arg1, %arg0, %c0_i32, %c0_i32_0 : i32, i32, i32, i32
  }
  func.func @transform_7(%arg0: i32, %arg1: i32) -> (i32, i32, i32) {
    %c0_i32 = arith.constant 0 : i32
    %c0_i32_0 = arith.constant 0 : i32
    %c0_i32_1 = arith.constant 0 : i32
    return %arg0, %c0_i32, %c0_i32_0 : i32, i32, i32
  }
}

</mosaic_0001>

<llo_original>
// kernel: call.1
$region0: #{call.1}
  #allocation0 [shape = 'u32[]', space=smem, size = 0x4, offset = 0x4, fixed_abs, tag = 'smem constant byte address 0x4 - core index']
  #allocation1 [shape = 'u32[72,128]{1,0:T(1,128)}', space=vmem, size = 0x9000, scoped, tag = 'internal scratch']
  #allocation2 [shape = 'f32[200,384]{1,0:T(8,128)}', space=vmem, size = 0x4b000, scoped, tag = 'scratch operand']
  #allocation3 [shape = 'f32[8,384]{1,0:T(8,128)}', space=vmem, size = 0x3000, scoped, tag = 'scratch operand']
  #allocation4 [shape = 'f32[8,384]{1,0:T(8,128)}', space=vmem, size = 0x3000, scoped, tag = 'scratch operand']
  %s0 = inlined_call_operand.hbm [shape: f32[1,2,8,512], index: 0, kind: input, shape index: {}]
  %s1 = inlined_call_operand.hbm [shape: f32[8,200], index: 1, kind: input, shape index: {}]
  %s2 = inlined_call_operand.vmem [shape: f32[8,1], index: 2, kind: input, shape index: {}]
  %s3 = inlined_call_operand.hbm [shape: f32[2,8,384], index: 3, kind: input, shape index: {}]
  %s4 = inlined_call_operand.hbm [shape: f32[2,8,384], index: 4, kind: input, shape index: {}]
  %s5 = inlined_call_operand.hbm [shape: f32[1,2,8,384], index: 5, kind: output, shape index: {0}]
  %s6 = inlined_call_operand.hbm [shape: f32[1,2,8,384], index: 6, kind: output, shape index: {1}]
  %s7 = inlined_call_operand.hbm [shape: f32[2,8,384], index: 7, kind: output, shape index: {2}]
  %8 = xla_tuple %s5, %s6, %s7
  %s9 = sld [smem:[#allocation0]]
  $region89: #{call.1} parent=0
    _
  %s11 = ssub.s32 1, %s9
  %s12 = scalar_select 0, %s11, %s9
  $region1: #{call.1} parent=0
    #allocation5 [shape = 'u8[32768]{0}', space=vmem, size = 0x8000, scoped, tag = 'input window, operand 0']
    #allocation6 [shape = 's32[2]{0}', space=sflag, size = 0x8, scoped, tag = 'scoped memory for call.1']
    #allocation7 [shape = 's32[2]{0}', space=sflag, size = 0x8, scoped, tag = 'scoped memory for call.1']
    #allocation8 [shape = 'u8[8192]{0}', space=vmem, size = 0x2000, scoped, tag = 'input window, operand 1, single buffered']
    #allocation9 [shape = 's32[1]{0}', space=sflag, size = 0x4, scoped, tag = 'scoped memory for call.1']
    #allocation10 [shape = 'u8[24576]{0}', space=vmem, size = 0x6000, scoped, tag = 'input window, operand 3']
    #allocation11 [shape = 'u8[24576]{0}', space=vmem, size = 0x6000, scoped, tag = 'input window, operand 4']
    #allocation12 [shape = 'u8[24576]{0}', space=vmem, size = 0x6000, scoped, tag = 'output window, operand 0']
    #allocation13 [shape = 'u8[24576]{0}', space=vmem, size = 0x6000, scoped, tag = 'output window, operand 1']
    #allocation14 [shape = 's32[2]{0}', space=sflag, size = 0x8, scoped, tag = 'scoped memory for call.1']
    #allocation15 [shape = 'u8[24576]{0}', space=vmem, size = 0x6000, scoped, tag = 'output window, operand 2']
    %13 = vsyncpa [#allocation6], 0
    %s14 = scalar_lea.sflag [#allocation6], 1
    %15 = vsyncpa %s14, 0
    %16 = vsyncpa [#allocation9], 0
    %17 = vsyncpa [#allocation7], 0
    %s18 = scalar_lea.sflag [#allocation7], 1
    %19 = vsyncpa %s18, 0
    %20 = vsyncpa [#allocation14], 0
    %s21 = scalar_lea.sflag [#allocation14], 1
    %22 = vsyncpa %s21, 0
    loop: start=0, step=1, limit=4
    $region2: #{call.1} parent=1 // loop_pre_header
      _
    $region3: #{call.1} parent=1 // loop_header
      %s24 = sphi 0, %s28
      %p25 = scmp.ge.s32.totalorder %s24, 4
      %s31 = sphi 0, %s43
      %s32 = sphi 0, %s39
      %s33 = sphi 0, %s31
      %s34 = sphi 0, %s32
      %s35 = sphi 0, %s33
      %s36 = sphi 0, %s34
      %s48 = sphi 0, %s50
      %s51 = sphi 0, %s48
      %s52 = sphi 0, %s51
      %s68 = sphi 0, %s52
      %s72 = sphi 0, %s72
      %s74 = sphi 0, %s72
      %s75 = sphi 0, %s74
      %s89 = sphi 0, %s75
      %s93 = sphi 0, %s93
      %s95 = sphi 0, %s93
      %s96 = sphi 0, %s95
      %s110 = sphi 0, %s96
      %s116 = sphi 0, %s118
      %s119 = sphi 0, %s116
      %s120 = sphi 0, %s119
      %s136 = sphi 0, %s120
      %s142 = sphi 0, %s144
      %s145 = sphi 0, %s142
      %s146 = sphi 0, %s145
      %s162 = sphi 0, %s146
      %s170 = sphi 0, %s172
      %s173 = sphi 0, %s170
      %s174 = sphi 0, %s173
      %s190 = sphi 0, %s174
      %s198 = sphi 0, %s200
      %s201 = sphi 0, %s198
      %s202 = sphi 0, %s201
      %s218 = sphi 0, %s202
      %s224 = sphi 0, %s226
      %s227 = sphi 0, %s224
      %s228 = sphi 0, %s227
      %s244 = sphi 0, %s228
    $region4: #{call.1} parent=1 // loop_header_branch
      %27 = sbr.rel (%p25) target = $region8
    $region5: #{call.1} parent=1 // loop_body
      %s29 = ssub.s32 %s24, 1
      %s30 = ssub.s32 %s24, 2
      %s37 = sadd.s32 1, %s32
      %p38 = scmp.ge.s32.totalorder %s37, 1
      %s39 = scalar_select %p38, 0, %s37
      %s40 = sadd.s32 1, %s31
      %s41 = scalar_select %p38, %s40, %s31
      %p42 = scmp.ge.s32.totalorder %s41, 2
      %s43 = scalar_select %p42, 0, %s41
      %s44 = ssub.s32 %s32, %s39
      %s45 = ssub.s32 %s31, %s43
      %s46 = sor.u32 %s44, %s45
      %p47 = scmp.eq.s32.totalorder %s46, 0
      %s49 = sadd.s32 %s48, 1
      %s50 = scalar_select %p47, %s48, %s49
      %p53 = pneg %p47
      %p54 = scmp.eq.s32.totalorder %s24, 1
      %p55 = por %p53, %p54
      %p56 = scmp.ne.s32.totalorder %s48, %s51
      %p57 = scmp.eq.s32.totalorder %s24, 0
      %p58 = por %p56, %p57
      %p59 = scmp.ne.s32.totalorder %s48, %s51
      %p60 = scmp.eq.s32.totalorder %s29, 1
      %p61 = por %p59, %p60
      %p62 = scmp.ne.s32.totalorder %s51, %s52
      %p63 = scmp.eq.s32.totalorder %s29, 0
      %p64 = por %p62, %p63
      %p65 = scmp.ne.s32.totalorder %s51, %s52
      %p66 = scmp.eq.s32.totalorder %s30, 1
      %p67 = por %p65, %p66
      %p69 = scmp.ne.s32.totalorder %s52, %s68
      %p70 = scmp.eq.s32.totalorder %s30, 0
      %p71 = por %p69, %p70
      %s73 = sadd.s32 %s72, 1
      %p76 = scmp.eq.s32.totalorder %s24, 1
      %p77 = scmp.ne.s32.totalorder %s72, %s74
      %p78 = scmp.eq.s32.totalorder %s24, 0
      %p79 = por %p77, %p78
      %p80 = scmp.ne.s32.totalorder %s72, %s74
      %p81 = scmp.eq.s32.totalorder %s29, 1
      %p82 = por %p80, %p81
      %p83 = scmp.ne.s32.totalorder %s74, %s75
      %p84 = scmp.eq.s32.totalorder %s29, 0
      %p85 = por %p83, %p84
      %p86 = scmp.ne.s32.totalorder %s74, %s75
      %p87 = scmp.eq.s32.totalorder %s30, 1
      %p88 = por %p86, %p87
      %p90 = scmp.ne.s32.totalorder %s75, %s89
      %p91 = scmp.eq.s32.totalorder %s30, 0
      %p92 = por %p90, %p91
      %s94 = sadd.s32 %s93, 1
      %p97 = scmp.eq.s32.totalorder %s24, 1
      %p98 = scmp.ne.s32.totalorder %s93, %s95
      %p99 = scmp.eq.s32.totalorder %s24, 0
      %p100 = por %p98, %p99
      %p101 = scmp.ne.s32.totalorder %s93, %s95
      %p102 = scmp.eq.s32.totalorder %s29, 1
      %p103 = por %p101, %p102
      %p104 = scmp.ne.s32.totalorder %s95, %s96
      %p105 = scmp.eq.s32.totalorder %s29, 0
      %p106 = por %p104, %p105
      %p107 = scmp.ne.s32.totalorder %s95, %s96
      %p108 = scmp.eq.s32.totalorder %s30, 1
      %p109 = por %p107, %p108
      %p111 = scmp.ne.s32.totalorder %s96, %s110
      %p112 = scmp.eq.s32.totalorder %s30, 0
      %p113 = por %p111, %p112
      %s114 = ssub.s32 %s31, %s43
      %p115 = scmp.eq.s32.totalorder %s114, 0
      %s117 = sadd.s32 %s116, 1
      %s118 = scalar_select %p115, %s116, %s117
      %p121 = pneg %p115
      %p122 = scmp.eq.s32.totalorder %s24, 1
      %p123 = por %p121, %p122
      %p124 = scmp.ne.s32.totalorder %s116, %s119
      %p125 = scmp.eq.s32.totalorder %s24, 0
      %p126 = por %p124, %p125
      %p127 = scmp.ne.s32.totalorder %s116, %s119
      %p128 = scmp.eq.s32.totalorder %s29, 1
      %p129 = por %p127, %p128
      %p130 = scmp.ne.s32.totalorder %s119, %s120
      %p131 = scmp.eq.s32.totalorder %s29, 0
      %p132 = por %p130, %p131
      %p133 = scmp.ne.s32.totalorder %s119, %s120
      %p134 = scmp.eq.s32.totalorder %s30, 1
      %p135 = por %p133, %p134
      %p137 = scmp.ne.s32.totalorder %s120, %s136
      %p138 = scmp.eq.s32.totalorder %s30, 0
      %p139 = por %p137, %p138
      %s140 = ssub.s32 %s31, %s43
      %p141 = scmp.eq.s32.totalorder %s140, 0
      %s143 = sadd.s32 %s142, 1
      %s144 = scalar_select %p141, %s142, %s143
      %p147 = pneg %p141
      %p148 = scmp.eq.s32.totalorder %s24, 1
      %p149 = por %p147, %p148
      %p150 = scmp.ne.s32.totalorder %s142, %s145
      %p151 = scmp.eq.s32.totalorder %s24, 0
      %p152 = por %p150, %p151
      %p153 = scmp.ne.s32.totalorder %s142, %s145
      %p154 = scmp.eq.s32.totalorder %s29, 1
      %p155 = por %p153, %p154
      %p156 = scmp.ne.s32.totalorder %s145, %s146
      %p157 = scmp.eq.s32.totalorder %s29, 0
      %p158 = por %p156, %p157
      %p159 = scmp.ne.s32.totalorder %s145, %s146
      %p160 = scmp.eq.s32.totalorder %s30, 1
      %p161 = por %p159, %p160
      %p163 = scmp.ne.s32.totalorder %s146, %s162
      %p164 = scmp.eq.s32.totalorder %s30, 0
      %p165 = por %p163, %p164
      %s166 = ssub.s32 %s32, %s39
      %s167 = ssub.s32 %s31, %s43
      %s168 = sor.u32 %s166, %s167
      %p169 = scmp.eq.s32.totalorder %s168, 0
      %s171 = sadd.s32 %s170, 1
      %s172 = scalar_select %p169, %s170, %s171
      %p175 = pneg %p169
      %p176 = scmp.eq.s32.totalorder %s24, 1
      %p177 = por %p175, %p176
      %p178 = scmp.ne.s32.totalorder %s170, %s173
      %p179 = scmp.eq.s32.totalorder %s24, 0
      %p180 = por %p178, %p179
      %p181 = scmp.ne.s32.totalorder %s170, %s173
      %p182 = scmp.eq.s32.totalorder %s29, 1
      %p183 = por %p181, %p182
      %p184 = scmp.ne.s32.totalorder %s173, %s174
      %p185 = scmp.eq.s32.totalorder %s29, 0
      %p186 = por %p184, %p185
      %p187 = scmp.ne.s32.totalorder %s173, %s174
      %p188 = scmp.eq.s32.totalorder %s30, 1
      %p189 = por %p187, %p188
      %p191 = scmp.ne.s32.totalorder %s174, %s190
      %p192 = scmp.eq.s32.totalorder %s30, 0
      %p193 = por %p191, %p192
      %s194 = ssub.s32 %s32, %s39
      %s195 = ssub.s32 %s31, %s43
      %s196 = sor.u32 %s194, %s195
      %p197 = scmp.eq.s32.totalorder %s196, 0
      %s199 = sadd.s32 %s198, 1
      %s200 = scalar_select %p197, %s198, %s199
      %p203 = pneg %p197
      %p204 = scmp.eq.s32.totalorder %s24, 1
      %p205 = por %p203, %p204
      %p206 = scmp.ne.s32.totalorder %s198, %s201
      %p207 = scmp.eq.s32.totalorder %s24, 0
      %p208 = por %p206, %p207
      %p209 = scmp.ne.s32.totalorder %s198, %s201
      %p210 = scmp.eq.s32.totalorder %s29, 1
      %p211 = por %p209, %p210
      %p212 = scmp.ne.s32.totalorder %s201, %s202
      %p213 = scmp.eq.s32.totalorder %s29, 0
      %p214 = por %p212, %p213
      %p215 = scmp.ne.s32.totalorder %s201, %s202
      %p216 = scmp.eq.s32.totalorder %s30, 1
      %p217 = por %p215, %p216
      %p219 = scmp.ne.s32.totalorder %s202, %s218
      %p220 = scmp.eq.s32.totalorder %s30, 0
      %p221 = por %p219, %p220
      %s222 = ssub.s32 %s31, %s43
      %p223 = scmp.eq.s32.totalorder %s222, 0
      %s225 = sadd.s32 %s224, 1
      %s226 = scalar_select %p223, %s224, %s225
      %p229 = pneg %p223
      %p230 = scmp.eq.s32.totalorder %s24, 1
      %p231 = por %p229, %p230
      %p232 = scmp.ne.s32.totalorder %s224, %s227
      %p233 = scmp.eq.s32.totalorder %s24, 0
      %p234 = por %p232, %p233
      %p235 = scmp.ne.s32.totalorder %s224, %s227
      %p236 = scmp.eq.s32.totalorder %s29, 1
      %p237 = por %p235, %p236
      %p238 = scmp.ne.s32.totalorder %s227, %s228
      %p239 = scmp.eq.s32.totalorder %s29, 0
      %p240 = por %p238, %p239
      %p241 = scmp.ne.s32.totalorder %s227, %s228
      %p242 = scmp.eq.s32.totalorder %s30, 1
      %p243 = por %p241, %p242
      %p245 = scmp.ne.s32.totalorder %s228, %s244
      %p246 = scmp.eq.s32.totalorder %s30, 0
      %p247 = por %p245, %p246
      %p248 = scmp.le.s32.totalorder 1, %s24
      %p249 = scmp.lt.s32.totalorder %s24, 3
      %p250 = pnand %p248, %p249
      %p251 = pneg %p250
      // Predicated region
      $region9: #{call.1} parent=5 // pred_check
        _
      $region10: #{call.1} parent=5 // pred_check_branch
        %253 = sbr.rel (%p250) target = $region12
      $region11: #{call.1} parent=5 // pred_region
        %s254 = ssub.s32 %s24, 1
        // Predicated region
        $region13: #{call.1} parent=11 // pred_check
          %p255 = pneg %p85
        $region14: #{call.1} parent=11 // pred_check_branch
          %257 = sbr.rel (%p255) target = $region16
        $region15: #{call.1} parent=11 // pred_region
          %259 = vsyncadd [#allocation9], 0
          %s261 = sshll.u32 %s1, 4
          %s262 = int_to_ptr.hbm [resolvable:$true] %s261
          %s263 = sshll.u32 [#allocation8], 4
          %s264 = int_to_ptr.vmem [resolvable:$true] %s263
          %266 = dma.hbm_to_vmem [thread:$0]  %s262, 256, %s264, [#allocation9]
        $region16: #{call.1} parent=11 // pred_fallthru
          _
        // Predicated region
        $region17: #{call.1} parent=11 // pred_check
          %p267 = pneg %p106
        $region18: #{call.1} parent=11 // pred_check_branch
          %269 = sbr.rel (%p267) target = $region20
        $region19: #{call.1} parent=11 // pred_region
          _
        $region20: #{call.1} parent=11 // pred_fallthru
          _
      $region12: #{call.1} parent=5 // pred_fallthru
        _
      %p270 = scmp.lt.s32.totalorder %s24, 2
      // Predicated region
      $region21: #{call.1} parent=5 // pred_check
        %p271 = pneg %p270
      $region22: #{call.1} parent=5 // pred_check_branch
        %273 = sbr.rel (%p271) target = $region24
      $region23: #{call.1} parent=5 // pred_region
        // Predicated region
        $region25: #{call.1} parent=23 // pred_check
          %p274 = pneg %p58
        $region26: #{call.1} parent=23 // pred_check_branch
          %276 = sbr.rel (%p274) target = $region28
        $region27: #{call.1} parent=23 // pred_region
          %s277 = sand.u32 %s24, 1
          %s278 = scalar_lea.sflag [#allocation6], %s277
          %s279 = sand.u32 %s48, 1
          %s280 = smul.addr %s279, 32
          %s281 = scalar_lea.vmem [#allocation5], %s280
          %283 = vsyncadd %s278, 0
          %s284 = smul.addr %s31, 4
          %s285 = smul.addr %s32, 8
          %s286 = sadd.s32 %s284, %s285
          %s287 = smul.addr %s286, 8
          %s288 = scalar_lea.hbm %s0, %s287
          %s290 = sshll.u32 %s288, 4
          %s291 = int_to_ptr.hbm [resolvable:$true] %s290
          %s292 = sshll.u32 %s281, 4
          %s293 = int_to_ptr.vmem [resolvable:$true] %s292
          %295 = dma.hbm_to_vmem [thread:$0]  %s291, 512, %s293, %s278
        $region28: #{call.1} parent=23 // pred_fallthru
          _
        // Predicated region
        $region29: #{call.1} parent=23 // pred_check
          %p296 = pneg %p126
        $region30: #{call.1} parent=23 // pred_check_branch
          %298 = sbr.rel (%p296) target = $region32
        $region31: #{call.1} parent=23 // pred_region
          %s299 = sand.u32 %s24, 1
          %s300 = scalar_lea.sflag [#allocation6], %s299
          %s301 = sand.u32 %s116, 1
          %s302 = smul.addr %s301, 24
          %s303 = scalar_lea.vmem [#allocation10], %s302
          %305 = vsyncadd %s300, 0
          %s306 = smul.addr %s31, 3
          %s307 = smul.addr %s306, 8
          %s308 = scalar_lea.hbm %s3, %s307
          %s310 = sshll.u32 %s308, 4
          %s311 = int_to_ptr.hbm [resolvable:$true] %s310
          %s312 = sshll.u32 %s303, 4
          %s313 = int_to_ptr.vmem [resolvable:$true] %s312
          %315 = dma.hbm_to_vmem [thread:$0]  %s311, 384, %s313, %s300
        $region32: #{call.1} parent=23 // pred_fallthru
          _
        // Predicated region
        $region33: #{call.1} parent=23 // pred_check
          %p316 = pneg %p152
        $region34: #{call.1} parent=23 // pred_check_branch
          %318 = sbr.rel (%p316) target = $region36
        $region35: #{call.1} parent=23 // pred_region
          %s319 = sand.u32 %s24, 1
          %s320 = scalar_lea.sflag [#allocation6], %s319
          %s321 = sand.u32 %s142, 1
          %s322 = smul.addr %s321, 24
          %s323 = scalar_lea.vmem [#allocation11], %s322
          %325 = vsyncadd %s320, 0
          %s326 = smul.addr %s31, 3
          %s327 = smul.addr %s326, 8
          %s328 = scalar_lea.hbm %s4, %s327
          %s330 = sshll.u32 %s328, 4
          %s331 = int_to_ptr.hbm [resolvable:$true] %s330
          %s332 = sshll.u32 %s323, 4
          %s333 = int_to_ptr.vmem [resolvable:$true] %s332
          %335 = dma.hbm_to_vmem [thread:$0]  %s331, 384, %s333, %s320
        $region36: #{call.1} parent=23 // pred_fallthru
          _
      $region24: #{call.1} parent=5 // pred_fallthru
        _
      %p336 = scmp.le.s32.totalorder 1, %s24
      %p337 = scmp.lt.s32.totalorder %s24, 3
      %p338 = pnand %p336, %p337
      %p339 = pneg %p338
      // Predicated region
      $region37: #{call.1} parent=5 // pred_check
        _
      $region38: #{call.1} parent=5 // pred_check_branch
        %341 = sbr.rel (%p338) target = $region40
      $region39: #{call.1} parent=5 // pred_region
        %s342 = ssub.s32 %s24, 1
        %s343 = sand.u32 %s29, 1
        %s344 = scalar_lea.sflag [#allocation6], %s343
        %s345 = sand.u32 %s51, 1
        %s346 = smul.addr %s345, 32
        %s347 = scalar_lea.vmem [#allocation5], %s346
        // Predicated region
        $region41: #{call.1} parent=39 // pred_check
          %p348 = pneg %p64
        $region42: #{call.1} parent=39 // pred_check_branch
          %350 = sbr.rel (%p348) target = $region44
        $region43: #{call.1} parent=39 // pred_region
          %352 = dma.done %s344, 512
        $region44: #{call.1} parent=39 // pred_fallthru
          _
        // Predicated region
        $region45: #{call.1} parent=39 // pred_check
          %p353 = pneg %p85
        $region46: #{call.1} parent=39 // pred_check_branch
          %355 = sbr.rel (%p353) target = $region48
        $region47: #{call.1} parent=39 // pred_region
          %357 = dma.done [#allocation9], 256
        $region48: #{call.1} parent=39 // pred_fallthru
          _
        %s358 = sand.u32 %s29, 1
        %s359 = scalar_lea.sflag [#allocation6], %s358
        %s360 = sand.u32 %s119, 1
        %s361 = smul.addr %s360, 24
        %s362 = scalar_lea.vmem [#allocation10], %s361
        // Predicated region
        $region49: #{call.1} parent=39 // pred_check
          %p363 = pneg %p132
        $region50: #{call.1} parent=39 // pred_check_branch
          %365 = sbr.rel (%p363) target = $region52
        $region51: #{call.1} parent=39 // pred_region
          %367 = dma.done %s359, 384
        $region52: #{call.1} parent=39 // pred_fallthru
          _
        %s368 = sand.u32 %s29, 1
        %s369 = scalar_lea.sflag [#allocation6], %s368
        %s370 = sand.u32 %s145, 1
        %s371 = smul.addr %s370, 24
        %s372 = scalar_lea.vmem [#allocation11], %s371
        // Predicated region
        $region53: #{call.1} parent=39 // pred_check
          %p373 = pneg %p158
        $region54: #{call.1} parent=39 // pred_check_branch
          %375 = sbr.rel (%p373) target = $region56
        $region55: #{call.1} parent=39 // pred_region
          %377 = dma.done %s369, 384
        $region56: #{call.1} parent=39 // pred_fallthru
          _
        %s378 = sand.u32 %s29, 1
        %s379 = scalar_lea.sflag [#allocation6], %s378
        %s380 = sand.u32 %s51, 1
        %s381 = smul.addr %s380, 32
        %s382 = scalar_lea.vmem [#allocation5], %s381
        %p383 = pneg %p64
        %p384 = pneg %p61
        %p385 = pneg %p85
        %p386 = pneg %p82
        %p387 = pneg %p106
        %p388 = pneg %p103
        %s389 = sand.u32 %s29, 1
        %s390 = scalar_lea.sflag [#allocation6], %s389
        %s391 = sand.u32 %s119, 1
        %s392 = smul.addr %s391, 24
        %s393 = scalar_lea.vmem [#allocation10], %s392
        %p394 = pneg %p132
        %p395 = pneg %p129
        %s396 = sand.u32 %s29, 1
        %s397 = scalar_lea.sflag [#allocation6], %s396
        %s398 = sand.u32 %s145, 1
        %s399 = smul.addr %s398, 24
        %s400 = scalar_lea.vmem [#allocation11], %s399
        %p401 = pneg %p158
        %p402 = pneg %p155
        %p403 = pneg %p186
        %p404 = pneg %p183
        %s405 = sand.u32 %s173, 1
        %s406 = scalar_lea.sflag [#allocation7], %s405
        %s407 = sand.u32 %s173, 1
        %s408 = smul.addr %s407, 24
        %s409 = scalar_lea.vmem [#allocation12], %s408
        %p410 = pneg %p214
        %p411 = pneg %p211
        %s412 = sand.u32 %s29, 1
        %s413 = scalar_lea.sflag [#allocation14], %s412
        %s414 = sand.u32 %s201, 1
        %s415 = smul.addr %s414, 24
        %s416 = scalar_lea.vmem [#allocation13], %s415
        %p417 = pneg %p240
        %p418 = pneg %p237
        %s419 = sand.u32 %s29, 1
        %s420 = scalar_lea.sflag [#allocation14], %s419
        %s421 = sand.u32 %s227, 1
        %s422 = smul.addr %s421, 24
        %s423 = scalar_lea.vmem [#allocation15], %s422
        %p424 = scmp.eq.s32.totalorder %s34, 0
        // Predicated region
        $region57: #{call.1} parent=39 // pred_check
          %p425 = pneg %p424
        $region58: #{call.1} parent=39 // pred_check_branch
          %427 = sbr.rel (%p425) target = $region60
        $region59: #{call.1} parent=39 // pred_region
          %v428 = vld [vmem:[%s362] sm:$0xff]
          %v429 = vld [vmem:[%s362 + $0x8] sm:$0xff]
          %v430 = vld [vmem:[%s362 + $0x10] sm:$0xff]
          %431 = vst [vmem:[#allocation3] sm:$0xff] %v428
          %432 = vst [vmem:[#allocation3 + $0x8] sm:$0xff] %v429
          %433 = vst [vmem:[#allocation3 + $0x10] sm:$0xff] %v430
          %v434 = vld [vmem:[%s372] sm:$0xff]
          %v435 = vld [vmem:[%s372 + $0x8] sm:$0xff]
          %v436 = vld [vmem:[%s372 + $0x10] sm:$0xff]
          %437 = vst [vmem:[#allocation4] sm:$0xff] %v434
          %438 = vst [vmem:[#allocation4 + $0x8] sm:$0xff] %v435
          %439 = vst [vmem:[#allocation4 + $0x10] sm:$0xff] %v436
        $region60: #{call.1} parent=39 // pred_fallthru
          _
        %v440 = vld [vmem:[%s347] sm:$0xff]
        %v441 = vld [vmem:[%s347 + $0x8] sm:$0xff]
        %v442 = vld [vmem:[%s347 + $0x10] sm:$0xff]
        %443 = vst [vmem:[#allocation2] sm:$0xff] %v440
        %444 = vst [vmem:[#allocation2 + $0x8] sm:$0xff] %v441
        %445 = vst [vmem:[#allocation2 + $0x10] sm:$0xff] %v442
        %v446 = vld [vmem:[%s347] sm:$0xff]
        %v447 = vld [vmem:[%s347 + $0x8] sm:$0xff]
        %v448 = vld [vmem:[%s347 + $0x10] sm:$0xff]
        %v449 = vld [vmem:[%s347 + $0x18] sm:$0xff]
        %454 = vrot.lane.b32.xlu0 %v446, 127
        %v455 = vpop.permute.xlu0 %454
        %456 = vrot.lane.b32.xlu0 %v447, 127
        %v457 = vpop.permute.xlu0 %456
        %458 = vrot.lane.b32.xlu0 %v448, 127
        %v459 = vpop.permute.xlu0 %458
        %460 = vrot.lane.b32.xlu0 %v449, 127
        %v461 = vpop.permute.xlu0 %460
        %vm462 = vcmask 1039360
        %v463 = vsel %vm462, %v455, %v457
        %v464 = vsel %vm462, %v457, %v459
        %v465 = vsel %vm462, %v459, %v461
        %469 = vst [vmem:[#allocation2 + $0x18] sm:$0xff] %v463
        %470 = vst [vmem:[#allocation2 + $0x20] sm:$0xff] %v464
        %471 = vst [vmem:[#allocation2 + $0x28] sm:$0xff] %v465
        %v472 = vld [vmem:[%s347] sm:$0xff]
        %v473 = vld [vmem:[%s347 + $0x8] sm:$0xff]
        %v474 = vld [vmem:[%s347 + $0x10] sm:$0xff]
        %v475 = vld [vmem:[%s347 + $0x18] sm:$0xff]
        %480 = vrot.lane.b32.xlu0 %v472, 126
        %v481 = vpop.permute.xlu0 %480
        %482 = vrot.lane.b32.xlu0 %v473, 126
        %v483 = vpop.permute.xlu0 %482
        %484 = vrot.lane.b32.xlu0 %v474, 126
        %v485 = vpop.permute.xlu0 %484
        %486 = vrot.lane.b32.xlu0 %v475, 126
        %v487 = vpop.permute.xlu0 %486
        %vm488 = vcmask 1031168
        %v489 = vsel %vm488, %v481, %v483
        %v490 = vsel %vm488, %v483, %v485
        %v491 = vsel %vm488, %v485, %v487
        %495 = vst [vmem:[#allocation2 + $0x30] sm:$0xff] %v489
        %496 = vst [vmem:[#allocation2 + $0x38] sm:$0xff] %v490
        %497 = vst [vmem:[#allocation2 + $0x40] sm:$0xff] %v491
        %v498 = vld [vmem:[%s347] sm:$0xff]
        %v499 = vld [vmem:[%s347 + $0x8] sm:$0xff]
        %v500 = vld [vmem:[%s347 + $0x10] sm:$0xff]
        %v501 = vld [vmem:[%s347 + $0x18] sm:$0xff]
        %506 = vrot.lane.b32.xlu0 %v498, 125
        %v507 = vpop.permute.xlu0 %506
        %508 = vrot.lane.b32.xlu0 %v499, 125
        %v509 = vpop.permute.xlu0 %508
        %510 = vrot.lane.b32.xlu0 %v500, 125
        %v511 = vpop.permute.xlu0 %510
        %512 = vrot.lane.b32.xlu0 %v501, 125
        %v513 = vpop.permute.xlu0 %512
        %vm514 = vcmask 1022976
        %v515 = vsel %vm514, %v507, %v509
        %v516 = vsel %vm514, %v509, %v511
        %v517 = vsel %vm514, %v511, %v513
        %521 = vst [vmem:[#allocation2 + $0x48] sm:$0xff] %v515
        %522 = vst [vmem:[#allocation2 + $0x50] sm:$0xff] %v516
        %523 = vst [vmem:[#allocation2 + $0x58] sm:$0xff] %v517
        %v524 = vld [vmem:[%s347] sm:$0xff]
        %v525 = vld [vmem:[%s347 + $0x8] sm:$0xff]
        %v526 = vld [vmem:[%s347 + $0x10] sm:$0xff]
        %v527 = vld [vmem:[%s347 + $0x18] sm:$0xff]
        %532 = vrot.lane.b32.xlu0 %v524, 124
        %v533 = vpop.permute.xlu0 %532
        %534 = vrot.lane.b32.xlu0 %v525, 124
        %v535 = vpop.permute.xlu0 %534
        %536 = vrot.lane.b32.xlu0 %v526, 124
        %v537 = vpop.permute.xlu0 %536
        %538 = vrot.lane.b32.xlu0 %v527, 124
        %v539 = vpop.permute.xlu0 %538
        %vm540 = vcmask 1014784
        %v541 = vsel %vm540, %v533, %v535
        %v542 = vsel %vm540, %v535, %v537
        %v543 = vsel %vm540, %v537, %v539
        %547 = vst [vmem:[#allocation2 + $0x60] sm:$0xff] %v541
        %548 = vst [vmem:[#allocation2 + $0x68] sm:$0xff] %v542
        %549 = vst [vmem:[#allocation2 + $0x70] sm:$0xff] %v543
        %v550 = vld [vmem:[%s347] sm:$0xff]
        %v551 = vld [vmem:[%s347 + $0x8] sm:$0xff]
        %v552 = vld [vmem:[%s347 + $0x10] sm:$0xff]
        %v553 = vld [vmem:[%s347 + $0x18] sm:$0xff]
        %558 = vrot.lane.b32.xlu0 %v550, 108
        %v559 = vpop.permute.xlu0 %558
        %560 = vrot.lane.b32.xlu0 %v551, 108
        %v561 = vpop.permute.xlu0 %560
        %562 = vrot.lane.b32.xlu0 %v552, 108
        %v563 = vpop.permute.xlu0 %562
        %564 = vrot.lane.b32.xlu0 %v553, 108
        %v565 = vpop.permute.xlu0 %564
        %vm566 = vcmask 883712
        %v567 = vsel %vm566, %v559, %v561
        %v568 = vsel %vm566, %v561, %v563
        %v569 = vsel %vm566, %v563, %v565
        %573 = vst [vmem:[#allocation2 + $0x78] sm:$0xff] %v567
        %574 = vst [vmem:[#allocation2 + $0x80] sm:$0xff] %v568
        %575 = vst [vmem:[#allocation2 + $0x88] sm:$0xff] %v569
        %v576 = vld [vmem:[%s347] sm:$0xff]
        %v577 = vld [vmem:[%s347 + $0x8] sm:$0xff]
        %v578 = vld [vmem:[%s347 + $0x10] sm:$0xff]
        %v579 = vld [vmem:[%s347 + $0x18] sm:$0xff]
        %584 = vrot.lane.b32.xlu0 %v576, 107
        %v585 = vpop.permute.xlu0 %584
        %586 = vrot.lane.b32.xlu0 %v577, 107
        %v587 = vpop.permute.xlu0 %586
        %588 = vrot.lane.b32.xlu0 %v578, 107
        %v589 = vpop.permute.xlu0 %588
        %590 = vrot.lane.b32.xlu0 %v579, 107
        %v591 = vpop.permute.xlu0 %590
        %vm592 = vcmask 875520
        %v593 = vsel %vm592, %v585, %v587
        %v594 = vsel %vm592, %v587, %v589
        %v595 = vsel %vm592, %v589, %v591
        %599 = vst [vmem:[#allocation2 + $0x90] sm:$0xff] %v593
        %600 = vst [vmem:[#allocation2 + $0x98] sm:$0xff] %v594
        %601 = vst [vmem:[#allocation2 + $0xa0] sm:$0xff] %v595
        %v602 = vld [vmem:[%s347] sm:$0xff]
        %v603 = vld [vmem:[%s347 + $0x8] sm:$0xff]
        %v604 = vld [vmem:[%s347 + $0x10] sm:$0xff]
        %v605 = vld [vmem:[%s347 + $0x18] sm:$0xff]
        %610 = vrot.lane.b32.xlu0 %v602, 106
        %v611 = vpop.permute.xlu0 %610
        %612 = vrot.lane.b32.xlu0 %v603, 106
        %v613 = vpop.permute.xlu0 %612
        %614 = vrot.lane.b32.xlu0 %v604, 106
        %v615 = vpop.permute.xlu0 %614
        %616 = vrot.lane.b32.xlu0 %v605, 106
        %v617 = vpop.permute.xlu0 %616
        %vm618 = vcmask 867328
        %v619 = vsel %vm618, %v611, %v613
        %v620 = vsel %vm618, %v613, %v615
        %v621 = vsel %vm618, %v615, %v617
        %625 = vst [vmem:[#allocation2 + $0xa8] sm:$0xff] %v619
        %626 = vst [vmem:[#allocation2 + $0xb0] sm:$0xff] %v620
        %627 = vst [vmem:[#allocation2 + $0xb8] sm:$0xff] %v621
        %v628 = vld [vmem:[%s347] sm:$0xff]
        %v629 = vld [vmem:[%s347 + $0x8] sm:$0xff]
        %v630 = vld [vmem:[%s347 + $0x10] sm:$0xff]
        %v631 = vld [vmem:[%s347 + $0x18] sm:$0xff]
        %636 = vrot.lane.b32.xlu0 %v628, 105
        %v637 = vpop.permute.xlu0 %636
        %638 = vrot.lane.b32.xlu0 %v629, 105
        %v639 = vpop.permute.xlu0 %638
        %640 = vrot.lane.b32.xlu0 %v630, 105
        %v641 = vpop.permute.xlu0 %640
        %642 = vrot.lane.b32.xlu0 %v631, 105
        %v643 = vpop.permute.xlu0 %642
        %vm644 = vcmask 859136
        %v645 = vsel %vm644, %v637, %v639
        %v646 = vsel %vm644, %v639, %v641
        %v647 = vsel %vm644, %v641, %v643
        %651 = vst [vmem:[#allocation2 + $0xc0] sm:$0xff] %v645
        %652 = vst [vmem:[#allocation2 + $0xc8] sm:$0xff] %v646
        %653 = vst [vmem:[#allocation2 + $0xd0] sm:$0xff] %v647
        %v654 = vld [vmem:[%s347] sm:$0xff]
        %v655 = vld [vmem:[%s347 + $0x8] sm:$0xff]
        %v656 = vld [vmem:[%s347 + $0x10] sm:$0xff]
        %v657 = vld [vmem:[%s347 + $0x18] sm:$0xff]
        %662 = vrot.lane.b32.xlu0 %v654, 104
        %v663 = vpop.permute.xlu0 %662
        %664 = vrot.lane.b32.xlu0 %v655, 104
        %v665 = vpop.permute.xlu0 %664
        %666 = vrot.lane.b32.xlu0 %v656, 104
        %v667 = vpop.permute.xlu0 %666
        %668 = vrot.lane.b32.xlu0 %v657, 104
        %v669 = vpop.permute.xlu0 %668
        %vm670 = vcmask 850944
        %v671 = vsel %vm670, %v663, %v665
        %v672 = vsel %vm670, %v665, %v667
        %v673 = vsel %vm670, %v667, %v669
        %677 = vst [vmem:[#allocation2 + $0xd8] sm:$0xff] %v671
        %678 = vst [vmem:[#allocation2 + $0xe0] sm:$0xff] %v672
        %679 = vst [vmem:[#allocation2 + $0xe8] sm:$0xff] %v673
        %v680 = vld [vmem:[%s347] sm:$0xff]
        %v681 = vld [vmem:[%s347 + $0x8] sm:$0xff]
        %v682 = vld [vmem:[%s347 + $0x10] sm:$0xff]
        %v683 = vld [vmem:[%s347 + $0x18] sm:$0xff]
        %688 = vrot.lane.b32.xlu0 %v680, 88
        %v689 = vpop.permute.xlu0 %688
        %690 = vrot.lane.b32.xlu0 %v681, 88
        %v691 = vpop.permute.xlu0 %690
        %692 = vrot.lane.b32.xlu0 %v682, 88
        %v693 = vpop.permute.xlu0 %692
        %694 = vrot.lane.b32.xlu0 %v683, 88
        %v695 = vpop.permute.xlu0 %694
        %vm696 = vcmask 719872
        %v697 = vsel %vm696, %v689, %v691
        %v698 = vsel %vm696, %v691, %v693
        %v699 = vsel %vm696, %v693, %v695
        %703 = vst [vmem:[#allocation2 + $0xf0] sm:$0xff] %v697
        %704 = vst [vmem:[#allocation2 + $0xf8] sm:$0xff] %v698
        %705 = vst [vmem:[#allocation2 + $0x100] sm:$0xff] %v699
        %v706 = vld [vmem:[%s347] sm:$0xff]
        %v707 = vld [vmem:[%s347 + $0x8] sm:$0xff]
        %v708 = vld [vmem:[%s347 + $0x10] sm:$0xff]
        %v709 = vld [vmem:[%s347 + $0x18] sm:$0xff]
        %714 = vrot.lane.b32.xlu0 %v706, 87
        %v715 = vpop.permute.xlu0 %714
        %716 = vrot.lane.b32.xlu0 %v707, 87
        %v717 = vpop.permute.xlu0 %716
        %718 = vrot.lane.b32.xlu0 %v708, 87
        %v719 = vpop.permute.xlu0 %718
        %720 = vrot.lane.b32.xlu0 %v709, 87
        %v721 = vpop.permute.xlu0 %720
        %vm722 = vcmask 711680
        %v723 = vsel %vm722, %v715, %v717
        %v724 = vsel %vm722, %v717, %v719
        %v725 = vsel %vm722, %v719, %v721
        %729 = vst [vmem:[#allocation2 + $0x108] sm:$0xff] %v723
        %730 = vst [vmem:[#allocation2 + $0x110] sm:$0xff] %v724
        %731 = vst [vmem:[#allocation2 + $0x118] sm:$0xff] %v725
        %v732 = vld [vmem:[%s347] sm:$0xff]
        %v733 = vld [vmem:[%s347 + $0x8] sm:$0xff]
        %v734 = vld [vmem:[%s347 + $0x10] sm:$0xff]
        %v735 = vld [vmem:[%s347 + $0x18] sm:$0xff]
        %740 = vrot.lane.b32.xlu0 %v732, 86
        %v741 = vpop.permute.xlu0 %740
        %742 = vrot.lane.b32.xlu0 %v733, 86
        %v743 = vpop.permute.xlu0 %742
        %744 = vrot.lane.b32.xlu0 %v734, 86
        %v745 = vpop.permute.xlu0 %744
        %746 = vrot.lane.b32.xlu0 %v735, 86
        %v747 = vpop.permute.xlu0 %746
        %vm748 = vcmask 703488
        %v749 = vsel %vm748, %v741, %v743
        %v750 = vsel %vm748, %v743, %v745
        %v751 = vsel %vm748, %v745, %v747
        %755 = vst [vmem:[#allocation2 + $0x120] sm:$0xff] %v749
        %756 = vst [vmem:[#allocation2 + $0x128] sm:$0xff] %v750
        %757 = vst [vmem:[#allocation2 + $0x130] sm:$0xff] %v751
        %v758 = vld [vmem:[%s347] sm:$0xff]
        %v759 = vld [vmem:[%s347 + $0x8] sm:$0xff]
        %v760 = vld [vmem:[%s347 + $0x10] sm:$0xff]
        %v761 = vld [vmem:[%s347 + $0x18] sm:$0xff]
        %766 = vrot.lane.b32.xlu0 %v758, 85
        %v767 = vpop.permute.xlu0 %766
        %768 = vrot.lane.b32.xlu0 %v759, 85
        %v769 = vpop.permute.xlu0 %768
        %770 = vrot.lane.b32.xlu0 %v760, 85
        %v771 = vpop.permute.xlu0 %770
        %772 = vrot.lane.b32.xlu0 %v761, 85
        %v773 = vpop.permute.xlu0 %772
        %vm774 = vcmask 695296
        %v775 = vsel %vm774, %v767, %v769
        %v776 = vsel %vm774, %v769, %v771
        %v777 = vsel %vm774, %v771, %v773
        %781 = vst [vmem:[#allocation2 + $0x138] sm:$0xff] %v775
        %782 = vst [vmem:[#allocation2 + $0x140] sm:$0xff] %v776
        %783 = vst [vmem:[#allocation2 + $0x148] sm:$0xff] %v777
        %v784 = vld [vmem:[%s347] sm:$0xff]
        %v785 = vld [vmem:[%s347 + $0x8] sm:$0xff]
        %v786 = vld [vmem:[%s347 + $0x10] sm:$0xff]
        %v787 = vld [vmem:[%s347 + $0x18] sm:$0xff]
        %792 = vrot.lane.b32.xlu0 %v784, 84
        %v793 = vpop.permute.xlu0 %792
        %794 = vrot.lane.b32.xlu0 %v785, 84
        %v795 = vpop.permute.xlu0 %794
        %796 = vrot.lane.b32.xlu0 %v786, 84
        %v797 = vpop.permute.xlu0 %796
        %798 = vrot.lane.b32.xlu0 %v787, 84
        %v799 = vpop.permute.xlu0 %798
        %vm800 = vcmask 687104
        %v801 = vsel %vm800, %v793, %v795
        %v802 = vsel %vm800, %v795, %v797
        %v803 = vsel %vm800, %v797, %v799
        %807 = vst [vmem:[#allocation2 + $0x150] sm:$0xff] %v801
        %808 = vst [vmem:[#allocation2 + $0x158] sm:$0xff] %v802
        %809 = vst [vmem:[#allocation2 + $0x160] sm:$0xff] %v803
        %v810 = vld [vmem:[%s347] sm:$0xff]
        %v811 = vld [vmem:[%s347 + $0x8] sm:$0xff]
        %v812 = vld [vmem:[%s347 + $0x10] sm:$0xff]
        %v813 = vld [vmem:[%s347 + $0x18] sm:$0xff]
        %818 = vrot.lane.b32.xlu0 %v810, 68
        %v819 = vpop.permute.xlu0 %818
        %820 = vrot.lane.b32.xlu0 %v811, 68
        %v821 = vpop.permute.xlu0 %820
        %822 = vrot.lane.b32.xlu0 %v812, 68
        %v823 = vpop.permute.xlu0 %822
        %824 = vrot.lane.b32.xlu0 %v813, 68
        %v825 = vpop.permute.xlu0 %824
        %vm826 = vcmask 556032
        %v827 = vsel %vm826, %v819, %v821
        %v828 = vsel %vm826, %v821, %v823
        %v829 = vsel %vm826, %v823, %v825
        %833 = vst [vmem:[#allocation2 + $0x168] sm:$0xff] %v827
        %834 = vst [vmem:[#allocation2 + $0x170] sm:$0xff] %v828
        %835 = vst [vmem:[#allocation2 + $0x178] sm:$0xff] %v829
        %v836 = vld [vmem:[%s347] sm:$0xff]
        %v837 = vld [vmem:[%s347 + $0x8] sm:$0xff]
        %v838 = vld [vmem:[%s347 + $0x10] sm:$0xff]
        %v839 = vld [vmem:[%s347 + $0x18] sm:$0xff]
        %844 = vrot.lane.b32.xlu0 %v836, 67
        %v845 = vpop.permute.xlu0 %844
        %846 = vrot.lane.b32.xlu0 %v837, 67
        %v847 = vpop.permute.xlu0 %846
        %848 = vrot.lane.b32.xlu0 %v838, 67
        %v849 = vpop.permute.xlu0 %848
        %850 = vrot.lane.b32.xlu0 %v839, 67
        %v851 = vpop.permute.xlu0 %850
        %vm852 = vcmask 547840
        %v853 = vsel %vm852, %v845, %v847
        %v854 = vsel %vm852, %v847, %v849
        %v855 = vsel %vm852, %v849, %v851
        %859 = vst [vmem:[#allocation2 + $0x180] sm:$0xff] %v853
        %860 = vst [vmem:[#allocation2 + $0x188] sm:$0xff] %v854
        %861 = vst [vmem:[#allocation2 + $0x190] sm:$0xff] %v855
        %v862 = vld [vmem:[%s347] sm:$0xff]
        %v863 = vld [vmem:[%s347 + $0x8] sm:$0xff]
        %v864 = vld [vmem:[%s347 + $0x10] sm:$0xff]
        %v865 = vld [vmem:[%s347 + $0x18] sm:$0xff]
        %870 = vrot.lane.b32.xlu0 %v862, 66
        %v871 = vpop.permute.xlu0 %870
        %872 = vrot.lane.b32.xlu0 %v863, 66
        %v873 = vpop.permute.xlu0 %872
        %874 = vrot.lane.b32.xlu0 %v864, 66
        %v875 = vpop.permute.xlu0 %874
        %876 = vrot.lane.b32.xlu0 %v865, 66
        %v877 = vpop.permute.xlu0 %876
        %vm878 = vcmask 539648
        %v879 = vsel %vm878, %v871, %v873
        %v880 = vsel %vm878, %v873, %v875
        %v881 = vsel %vm878, %v875, %v877
        %885 = vst [vmem:[#allocation2 + $0x198] sm:$0xff] %v879
        %886 = vst [vmem:[#allocation2 + $0x1a0] sm:$0xff] %v880
        %887 = vst [vmem:[#allocation2 + $0x1a8] sm:$0xff] %v881
        %v888 = vld [vmem:[%s347] sm:$0xff]
        %v889 = vld [vmem:[%s347 + $0x8] sm:$0xff]
        %v890 = vld [vmem:[%s347 + $0x10] sm:$0xff]
        %v891 = vld [vmem:[%s347 + $0x18] sm:$0xff]
        %896 = vrot.lane.b32.xlu0 %v888, 65
        %v897 = vpop.permute.xlu0 %896
        %898 = vrot.lane.b32.xlu0 %v889, 65
        %v899 = vpop.permute.xlu0 %898
        %900 = vrot.lane.b32.xlu0 %v890, 65
        %v901 = vpop.permute.xlu0 %900
        %902 = vrot.lane.b32.xlu0 %v891, 65
        %v903 = vpop.permute.xlu0 %902
        %vm904 = vcmask 531456
        %v905 = vsel %vm904, %v897, %v899
        %v906 = vsel %vm904, %v899, %v901
        %v907 = vsel %vm904, %v901, %v903
        %911 = vst [vmem:[#allocation2 + $0x1b0] sm:$0xff] %v905
        %912 = vst [vmem:[#allocation2 + $0x1b8] sm:$0xff] %v906
        %913 = vst [vmem:[#allocation2 + $0x1c0] sm:$0xff] %v907
        %v914 = vld [vmem:[%s347] sm:$0xff]
        %v915 = vld [vmem:[%s347 + $0x8] sm:$0xff]
        %v916 = vld [vmem:[%s347 + $0x10] sm:$0xff]
        %v917 = vld [vmem:[%s347 + $0x18] sm:$0xff]
        %922 = vrot.lane.b32.xlu0 %v914, 64
        %v923 = vpop.permute.xlu0 %922
        %924 = vrot.lane.b32.xlu0 %v915, 64
        %v925 = vpop.permute.xlu0 %924
        %926 = vrot.lane.b32.xlu0 %v916, 64
        %v927 = vpop.permute.xlu0 %926
        %928 = vrot.lane.b32.xlu0 %v917, 64
        %v929 = vpop.permute.xlu0 %928
        %vm930 = vcmask 523264
        %v931 = vsel %vm930, %v923, %v925
        %v932 = vsel %vm930, %v925, %v927
        %v933 = vsel %vm930, %v927, %v929
        %937 = vst [vmem:[#allocation2 + $0x1c8] sm:$0xff] %v931
        %938 = vst [vmem:[#allocation2 + $0x1d0] sm:$0xff] %v932
        %939 = vst [vmem:[#allocation2 + $0x1d8] sm:$0xff] %v933
        %v940 = vld [vmem:[%s347] sm:$0xff]
        %v941 = vld [vmem:[%s347 + $0x8] sm:$0xff]
        %v942 = vld [vmem:[%s347 + $0x10] sm:$0xff]
        %v943 = vld [vmem:[%s347 + $0x18] sm:$0xff]
        %948 = vrot.lane.b32.xlu0 %v940, 48
        %v949 = vpop.permute.xlu0 %948
        %950 = vrot.lane.b32.xlu0 %v941, 48
        %v951 = vpop.permute.xlu0 %950
        %952 = vrot.lane.b32.xlu0 %v942, 48
        %v953 = vpop.permute.xlu0 %952
        %954 = vrot.lane.b32.xlu0 %v943, 48
        %v955 = vpop.permute.xlu0 %954
        %vm956 = vcmask 392192
        %v957 = vsel %vm956, %v949, %v951
        %v958 = vsel %vm956, %v951, %v953
        %v959 = vsel %vm956, %v953, %v955
        %963 = vst [vmem:[#allocation2 + $0x1e0] sm:$0xff] %v957
        %964 = vst [vmem:[#allocation2 + $0x1e8] sm:$0xff] %v958
        %965 = vst [vmem:[#allocation2 + $0x1f0] sm:$0xff] %v959
        %v966 = vld [vmem:[%s347] sm:$0xff]
        %v967 = vld [vmem:[%s347 + $0x8] sm:$0xff]
        %v968 = vld [vmem:[%s347 + $0x10] sm:$0xff]
        %v969 = vld [vmem:[%s347 + $0x18] sm:$0xff]
        %974 = vrot.lane.b32.xlu0 %v966, 47
        %v975 = vpop.permute.xlu0 %974
        %976 = vrot.lane.b32.xlu0 %v967, 47
        %v977 = vpop.permute.xlu0 %976
        %978 = vrot.lane.b32.xlu0 %v968, 47
        %v979 = vpop.permute.xlu0 %978
        %980 = vrot.lane.b32.xlu0 %v969, 47
        %v981 = vpop.permute.xlu0 %980
        %vm982 = vcmask 384000
        %v983 = vsel %vm982, %v975, %v977
        %v984 = vsel %vm982, %v977, %v979
        %v985 = vsel %vm982, %v979, %v981
        %989 = vst [vmem:[#allocation2 + $0x1f8] sm:$0xff] %v983
        %990 = vst [vmem:[#allocation2 + $0x200] sm:$0xff] %v984
        %991 = vst [vmem:[#allocation2 + $0x208] sm:$0xff] %v985
        %v992 = vld [vmem:[%s347] sm:$0xff]
        %v993 = vld [vmem:[%s347 + $0x8] sm:$0xff]
        %v994 = vld [vmem:[%s347 + $0x10] sm:$0xff]
        %v995 = vld [vmem:[%s347 + $0x18] sm:$0xff]
        %1000 = vrot.lane.b32.xlu0 %v992, 46
        %v1001 = vpop.permute.xlu0 %1000
        %1002 = vrot.lane.b32.xlu0 %v993, 46
        %v1003 = vpop.permute.xlu0 %1002
        %1004 = vrot.lane.b32.xlu0 %v994, 46
        %v1005 = vpop.permute.xlu0 %1004
        %1006 = vrot.lane.b32.xlu0 %v995, 46
        %v1007 = vpop.permute.xlu0 %1006
        %vm1008 = vcmask 375808
        %v1009 = vsel %vm1008, %v1001, %v1003
        %v1010 = vsel %vm1008, %v1003, %v1005
        %v1011 = vsel %vm1008, %v1005, %v1007
        %1015 = vst [vmem:[#allocation2 + $0x210] sm:$0xff] %v1009
        %1016 = vst [vmem:[#allocation2 + $0x218] sm:$0xff] %v1010
        %1017 = vst [vmem:[#allocation2 + $0x220] sm:$0xff] %v1011
        %v1018 = vld [vmem:[%s347] sm:$0xff]
        %v1019 = vld [vmem:[%s347 + $0x8] sm:$0xff]
        %v1020 = vld [vmem:[%s347 + $0x10] sm:$0xff]
        %v1021 = vld [vmem:[%s347 + $0x18] sm:$0xff]
        %1026 = vrot.lane.b32.xlu0 %v1018, 45
        %v1027 = vpop.permute.xlu0 %1026
        %1028 = vrot.lane.b32.xlu0 %v1019, 45
        %v1029 = vpop.permute.xlu0 %1028
        %1030 = vrot.lane.b32.xlu0 %v1020, 45
        %v1031 = vpop.permute.xlu0 %1030
        %1032 = vrot.lane.b32.xlu0 %v1021, 45
        %v1033 = vpop.permute.xlu0 %1032
        %vm1034 = vcmask 367616
        %v1035 = vsel %vm1034, %v1027, %v1029
        %v1036 = vsel %vm1034, %v1029, %v1031
        %v1037 = vsel %vm1034, %v1031, %v1033
        %1041 = vst [vmem:[#allocation2 + $0x228] sm:$0xff] %v1035
        %1042 = vst [vmem:[#allocation2 + $0x230] sm:$0xff] %v1036
        %1043 = vst [vmem:[#allocation2 + $0x238] sm:$0xff] %v1037
        %v1044 = vld [vmem:[%s347] sm:$0xff]
        %v1045 = vld [vmem:[%s347 + $0x8] sm:$0xff]
        %v1046 = vld [vmem:[%s347 + $0x10] sm:$0xff]
        %v1047 = vld [vmem:[%s347 + $0x18] sm:$0xff]
        %1052 = vrot.lane.b32.xlu0 %v1044, 44
        %v1053 = vpop.permute.xlu0 %1052
        %1054 = vrot.lane.b32.xlu0 %v1045, 44
        %v1055 = vpop.permute.xlu0 %1054
        %1056 = vrot.lane.b32.xlu0 %v1046, 44
        %v1057 = vpop.permute.xlu0 %1056
        %1058 = vrot.lane.b32.xlu0 %v1047, 44
        %v1059 = vpop.permute.xlu0 %1058
        %vm1060 = vcmask 359424
        %v1061 = vsel %vm1060, %v1053, %v1055
        %v1062 = vsel %vm1060, %v1055, %v1057
        %v1063 = vsel %vm1060, %v1057, %v1059
        %1067 = vst [vmem:[#allocation2 + $0x240] sm:$0xff] %v1061
        %1068 = vst [vmem:[#allocation2 + $0x248] sm:$0xff] %v1062
        %1069 = vst [vmem:[#allocation2 + $0x250] sm:$0xff] %v1063
        %v1070 = vld [vmem:[#allocation8] sm:$0xff]
        %v1071 = vld [vmem:[#allocation8 + $0x8] sm:$0xff]
        %v1072 = vld [vmem:[#allocation2] sm:$0xff]
        %v1073 = vld [vmem:[#allocation2 + $0x8] sm:$0xff]
        %v1074 = vld [vmem:[#allocation2 + $0x10] sm:$0xff]
        %v1075 = vld [vmem:[#allocation2 + $0x18] sm:$0xff]
        %v1076 = vld [vmem:[#allocation2 + $0x20] sm:$0xff]
        %v1077 = vld [vmem:[#allocation2 + $0x28] sm:$0xff]
        %v1078 = vld [vmem:[#allocation2 + $0x30] sm:$0xff]
        %v1079 = vld [vmem:[#allocation2 + $0x38] sm:$0xff]
        %v1080 = vld [vmem:[#allocation2 + $0x40] sm:$0xff]
        %v1081 = vld [vmem:[#allocation2 + $0x48] sm:$0xff]
        %v1082 = vld [vmem:[#allocation2 + $0x50] sm:$0xff]
        %v1083 = vld [vmem:[#allocation2 + $0x58] sm:$0xff]
        %v1084 = vld [vmem:[#allocation2 + $0x60] sm:$0xff]
        %v1085 = vld [vmem:[#allocation2 + $0x68] sm:$0xff]
        %v1086 = vld [vmem:[#allocation2 + $0x70] sm:$0xff]
        %v1087 = vld [vmem:[#allocation2 + $0x78] sm:$0xff]
        %v1088 = vld [vmem:[#allocation2 + $0x80] sm:$0xff]
        %v1089 = vld [vmem:[#allocation2 + $0x88] sm:$0xff]
        %v1090 = vld [vmem:[#allocation2 + $0x90] sm:$0xff]
        %v1091 = vld [vmem:[#allocation2 + $0x98] sm:$0xff]
        %v1092 = vld [vmem:[#allocation2 + $0xa0] sm:$0xff]
        %v1093 = vld [vmem:[#allocation2 + $0xa8] sm:$0xff]
        %v1094 = vld [vmem:[#allocation2 + $0xb0] sm:$0xff]
        %v1095 = vld [vmem:[#allocation2 + $0xb8] sm:$0xff]
        %v1096 = vld [vmem:[#allocation2 + $0xc0] sm:$0xff]
        %v1097 = vld [vmem:[#allocation2 + $0xc8] sm:$0xff]
        %v1098 = vld [vmem:[#allocation2 + $0xd0] sm:$0xff]
        %v1099 = vld [vmem:[#allocation2 + $0xd8] sm:$0xff]
        %v1100 = vld [vmem:[#allocation2 + $0xe0] sm:$0xff]
        %v1101 = vld [vmem:[#allocation2 + $0xe8] sm:$0xff]
        %v1102 = vld [vmem:[#allocation2 + $0xf0] sm:$0xff]
        %v1103 = vld [vmem:[#allocation2 + $0xf8] sm:$0xff]
        %v1104 = vld [vmem:[#allocation2 + $0x100] sm:$0xff]
        %v1105 = vld [vmem:[#allocation2 + $0x108] sm:$0xff]
        %v1106 = vld [vmem:[#allocation2 + $0x110] sm:$0xff]
        %v1107 = vld [vmem:[#allocation2 + $0x118] sm:$0xff]
        %v1108 = vld [vmem:[#allocation2 + $0x120] sm:$0xff]
        %v1109 = vld [vmem:[#allocation2 + $0x128] sm:$0xff]
        %v1110 = vld [vmem:[#allocation2 + $0x130] sm:$0xff]
        %v1111 = vld [vmem:[#allocation2 + $0x138] sm:$0xff]
        %v1112 = vld [vmem:[#allocation2 + $0x140] sm:$0xff]
        %v1113 = vld [vmem:[#allocation2 + $0x148] sm:$0xff]
        %v1114 = vld [vmem:[#allocation2 + $0x150] sm:$0xff]
        %v1115 = vld [vmem:[#allocation2 + $0x158] sm:$0xff]
        %v1116 = vld [vmem:[#allocation2 + $0x160] sm:$0xff]
        %v1117 = vld [vmem:[#allocation2 + $0x168] sm:$0xff]
        %v1118 = vld [vmem:[#allocation2 + $0x170] sm:$0xff]
        %v1119 = vld [vmem:[#allocation2 + $0x178] sm:$0xff]
        %v1120 = vld [vmem:[#allocation2 + $0x180] sm:$0xff]
        %v1121 = vld [vmem:[#allocation2 + $0x188] sm:$0xff]
        %v1122 = vld [vmem:[#allocation2 + $0x190] sm:$0xff]
        %v1123 = vld [vmem:[#allocation2 + $0x198] sm:$0xff]
        %v1124 = vld [vmem:[#allocation2 + $0x1a0] sm:$0xff]
        %v1125 = vld [vmem:[#allocation2 + $0x1a8] sm:$0xff]
        %v1126 = vld [vmem:[#allocation2 + $0x1b0] sm:$0xff]
        %v1127 = vld [vmem:[#allocation2 + $0x1b8] sm:$0xff]
        %v1128 = vld [vmem:[#allocation2 + $0x1c0] sm:$0xff]
        %v1129 = vld [vmem:[#allocation2 + $0x1c8] sm:$0xff]
        %v1130 = vld [vmem:[#allocation2 + $0x1d0] sm:$0xff]
        %v1131 = vld [vmem:[#allocation2 + $0x1d8] sm:$0xff]
        %v1132 = vld [vmem:[#allocation2 + $0x1e0] sm:$0xff]
        %v1133 = vld [vmem:[#allocation2 + $0x1e8] sm:$0xff]
        %v1134 = vld [vmem:[#allocation2 + $0x1f0] sm:$0xff]
        %v1135 = vld [vmem:[#allocation2 + $0x1f8] sm:$0xff]
        %v1136 = vld [vmem:[#allocation2 + $0x200] sm:$0xff]
        %v1137 = vld [vmem:[#allocation2 + $0x208] sm:$0xff]
        %v1138 = vld [vmem:[#allocation2 + $0x210] sm:$0xff]
        %v1139 = vld [vmem:[#allocation2 + $0x218] sm:$0xff]
        %v1140 = vld [vmem:[#allocation2 + $0x220] sm:$0xff]
        %v1141 = vld [vmem:[#allocation2 + $0x228] sm:$0xff]
        %v1142 = vld [vmem:[#allocation2 + $0x230] sm:$0xff]
        %v1143 = vld [vmem:[#allocation2 + $0x238] sm:$0xff]
        %v1144 = vld [vmem:[#allocation2 + $0x240] sm:$0xff]
        %v1145 = vld [vmem:[#allocation2 + $0x248] sm:$0xff]
        %v1146 = vld [vmem:[#allocation2 + $0x250] sm:$0xff]
        %v1147 = vld [vmem:[%s2] sm:$0xff]
        %1149 = vset.pattern.permute.xlu0 0
        %1150 = vperm.xlu0 %1149, %v1147
        %v1151 = vpop.permute.xlu0 %1150
        %vm1153 = vcmask 588800
        %v1155 = vsel %vm1153, %v1071, 0
        %1157 = vmatpush.msra.mxu0 %v1117
        %1158 = vmatpush.msra.mxu0 %v1114
        %1159 = vmatpush.msra.mxu0 %v1111
        %1160 = vmatpush.msra.mxu0 %v1108
        %1161 = vmatpush.msra.mxu0 %v1105
        %1162 = vmatpush.msra.mxu0 %v1102
        %1163 = vmatpush.msra.mxu0 %v1099
        %1164 = vmatpush.msra.mxu0 %v1096
        %1165 = vmatpush.msra.mxu0 %v1093
        %1166 = vmatpush.msra.mxu0 %v1090
        %1167 = vmatpush.msra.mxu0 %v1087
        %1168 = vmatpush.msra.mxu0 %v1084
        %1169 = vmatpush.msra.mxu0 %v1081
        %1170 = vmatpush.msra.mxu0 %v1078
        %1171 = vmatpush.msra.mxu0 %v1075
        %1172 = vmatpush.msra.mxu0 %v1072
        %1173 = vmatmul.f32.gmra.mxu0 %v1070
        %v1174 = vpop.f32.mrf.mxu0
        %v1175 = vadd.f32 %v1151, %v1174
        %1176 = vdwg.mxu0
        %1177 = vmatpush.msra.mxu0 0.0
        %1178 = vmatpush.msra.mxu0 0.0
        %1179 = vmatpush.msra.mxu0 0.0
        %1180 = vmatpush.msra.mxu0 0.0
        %1181 = vmatpush.msra.mxu0 0.0
        %1182 = vmatpush.msra.mxu0 0.0
        %1183 = vmatpush.msra.mxu0 0.0
        %1184 = vmatpush.msra.mxu0 %v1144
        %1185 = vmatpush.msra.mxu0 %v1141
        %1186 = vmatpush.msra.mxu0 %v1138
        %1187 = vmatpush.msra.mxu0 %v1135
        %1188 = vmatpush.msra.mxu0 %v1132
        %1189 = vmatpush.msra.mxu0 %v1129
        %1190 = vmatpush.msra.mxu0 %v1126
        %1191 = vmatpush.msra.mxu0 %v1123
        %1192 = vmatpush.msra.mxu0 %v1120
        %1193 = vmatmul.f32.gmra.mxu0 %v1155
        %v1194 = vpop.f32.mrf.mxu0
        %v1195 = vadd.f32 %v1175, %v1194
        %1196 = vdwg.mxu0
        %1197 = vmatpush.msra.mxu0 %v1118
        %1198 = vmatpush.msra.mxu0 %v1115
        %1199 = vmatpush.msra.mxu0 %v1112
        %1200 = vmatpush.msra.mxu0 %v1109
        %1201 = vmatpush.msra.mxu0 %v1106
        %1202 = vmatpush.msra.mxu0 %v1103
        %1203 = vmatpush.msra.mxu0 %v1100
        %1204 = vmatpush.msra.mxu0 %v1097
        %1205 = vmatpush.msra.mxu0 %v1094
        %1206 = vmatpush.msra.mxu0 %v1091
        %1207 = vmatpush.msra.mxu0 %v1088
        %1208 = vmatpush.msra.mxu0 %v1085
        %1209 = vmatpush.msra.mxu0 %v1082
        %1210 = vmatpush.msra.mxu0 %v1079
        %1211 = vmatpush.msra.mxu0 %v1076
        %1212 = vmatpush.msra.mxu0 %v1073
        %1213 = vmatmul.f32.gmra.mxu0 %v1070
        %v1214 = vpop.f32.mrf.mxu0
        %v1215 = vadd.f32 %v1151, %v1214
        %1216 = vdwg.mxu0
        %1217 = vmatpush.msra.mxu0 0.0
        %1218 = vmatpush.msra.mxu0 0.0
        %1219 = vmatpush.msra.mxu0 0.0
        %1220 = vmatpush.msra.mxu0 0.0
        %1221 = vmatpush.msra.mxu0 0.0
        %1222 = vmatpush.msra.mxu0 0.0
        %1223 = vmatpush.msra.mxu0 0.0
        %1224 = vmatpush.msra.mxu0 %v1145
        %1225 = vmatpush.msra.mxu0 %v1142
        %1226 = vmatpush.msra.mxu0 %v1139
        %1227 = vmatpush.msra.mxu0 %v1136
        %1228 = vmatpush.msra.mxu0 %v1133
        %1229 = vmatpush.msra.mxu0 %v1130
        %1230 = vmatpush.msra.mxu0 %v1127
        %1231 = vmatpush.msra.mxu0 %v1124
        %1232 = vmatpush.msra.mxu0 %v1121
        %1233 = vmatmul.f32.gmra.mxu0 %v1155
        %v1234 = vpop.f32.mrf.mxu0
        %v1235 = vadd.f32 %v1215, %v1234
        %1236 = vdwg.mxu0
        %1237 = vmatpush.msra.mxu0 %v1119
        %1238 = vmatpush.msra.mxu0 %v1116
        %1239 = vmatpush.msra.mxu0 %v1113
        %1240 = vmatpush.msra.mxu0 %v1110
        %1241 = vmatpush.msra.mxu0 %v1107
        %1242 = vmatpush.msra.mxu0 %v1104
        %1243 = vmatpush.msra.mxu0 %v1101
        %1244 = vmatpush.msra.mxu0 %v1098
        %1245 = vmatpush.msra.mxu0 %v1095
        %1246 = vmatpush.msra.mxu0 %v1092
        %1247 = vmatpush.msra.mxu0 %v1089
        %1248 = vmatpush.msra.mxu0 %v1086
        %1249 = vmatpush.msra.mxu0 %v1083
        %1250 = vmatpush.msra.mxu0 %v1080
        %1251 = vmatpush.msra.mxu0 %v1077
        %1252 = vmatpush.msra.mxu0 %v1074
        %1253 = vmatmul.f32.gmra.mxu0 %v1070
        %v1254 = vpop.f32.mrf.mxu0
        %v1255 = vadd.f32 %v1151, %v1254
        %1256 = vdwg.mxu0
        %1257 = vmatpush.msra.mxu0 0.0
        %1258 = vmatpush.msra.mxu0 0.0
        %1259 = vmatpush.msra.mxu0 0.0
        %1260 = vmatpush.msra.mxu0 0.0
        %1261 = vmatpush.msra.mxu0 0.0
        %1262 = vmatpush.msra.mxu0 0.0
        %1263 = vmatpush.msra.mxu0 0.0
        %1264 = vmatpush.msra.mxu0 %v1146
        %1265 = vmatpush.msra.mxu0 %v1143
        %1266 = vmatpush.msra.mxu0 %v1140
        %1267 = vmatpush.msra.mxu0 %v1137
        %1268 = vmatpush.msra.mxu0 %v1134
        %1269 = vmatpush.msra.mxu0 %v1131
        %1270 = vmatpush.msra.mxu0 %v1128
        %1271 = vmatpush.msra.mxu0 %v1125
        %1272 = vmatpush.msra.mxu0 %v1122
        %1273 = vmatmul.f32.gmra.mxu0 %v1155
        %v1274 = vpop.f32.mrf.mxu0
        %v1275 = vadd.f32 %v1255, %v1274
        %1276 = vdwg.mxu0
        %v1277 = vmul.f32 %v1195, 10.0
        %v1278 = vmul.f32 %v1235, 10.0
        %v1279 = vmul.f32 %v1275, 10.0
        %v1280 = vld [vmem:[#allocation3] sm:$0xff]
        %v1281 = vld [vmem:[#allocation3 + $0x8] sm:$0xff]
        %v1282 = vld [vmem:[#allocation3 + $0x10] sm:$0xff]
        %v1283 = vmul.f32 %v1280, 0.9
        %v1284 = vmul.f32 %v1281, 0.9
        %v1285 = vmul.f32 %v1282, 0.9
        %v1286 = vadd.f32 %v1277, %v1283
        %v1287 = vadd.f32 %v1278, %v1284
        %v1288 = vadd.f32 %v1279, %v1285
        %v1289 = vld [vmem:[#allocation4] sm:$0xff]
        %v1290 = vld [vmem:[#allocation4 + $0x8] sm:$0xff]
        %v1291 = vld [vmem:[#allocation4 + $0x10] sm:$0xff]
        %v1292 = vmul.f32 %v1289, 0.95
        %v1293 = vmul.f32 %v1290, 0.95
        %v1294 = vmul.f32 %v1291, 0.95
        %v1295 = vmul.f32 %v1286, 20.0
        %v1296 = vmul.f32 %v1287, 20.0
        %v1297 = vmul.f32 %v1288, 20.0
        %v1298 = vadd.f32 %v1292, %v1295
        %v1299 = vadd.f32 %v1293, %v1296
        %v1300 = vadd.f32 %v1294, %v1297
        %1301 = vst [vmem:[#allocation3] sm:$0xff] %v1286
        %1302 = vst [vmem:[#allocation3 + $0x8] sm:$0xff] %v1287
        %1303 = vst [vmem:[#allocation3 + $0x10] sm:$0xff] %v1288
        %1304 = vst [vmem:[#allocation4] sm:$0xff] %v1298
        %1305 = vst [vmem:[#allocation4 + $0x8] sm:$0xff] %v1299
        %1306 = vst [vmem:[#allocation4 + $0x10] sm:$0xff] %v1300
        %1307 = vst [vmem:[%s423] sm:$0xff] %v1286
        %1308 = vst [vmem:[%s423 + $0x8] sm:$0xff] %v1287
        %1309 = vst [vmem:[%s423 + $0x10] sm:$0xff] %v1288
        %1310 = vst [vmem:[%s416] sm:$0xff] %v1298
        %1311 = vst [vmem:[%s416 + $0x8] sm:$0xff] %v1299
        %1312 = vst [vmem:[%s416 + $0x10] sm:$0xff] %v1300
        %v1313 = vxor.u32 %v1298, 2147483648
        %v1314 = vxor.u32 %v1299, 2147483648
        %v1315 = vxor.u32 %v1300, 2147483648
        %v1316 = vmul.f32 %v1313, 1.442695
        %v1317 = vpow.pop %v1316
        %v1318 = vmul.f32 %v1314, 1.442695
        %v1319 = vpow.pop %v1318
        %v1320 = vmul.f32 %v1315, 1.442695
        %v1321 = vpow.pop %v1320
        %v1322 = vadd.f32 %v1317, 1.0
        %v1323 = vadd.f32 %v1319, 1.0
        %v1324 = vadd.f32 %v1321, 1.0
        %v1325 = vrcp.pop %v1322
        %v1326 = vmul.f32 %v1322, %v1325
        %v1327 = vsub.f32 1.0, %v1326
        %v1328 = vmul.f32 %v1325, %v1327
        %v1329 = vadd.f32 %v1325, %v1328
        %vm1330 = vweird.f32 %v1322
        %vm1331 = vweird.f32 %v1325
        %vm1332 = vmor %vm1330, %vm1331
        %v1333 = vsel %vm1332, %v1325, %v1329
        %v1334 = vand.u32 2147483647, %v1322
        %vm1335 = vcmp.eq.f32.partialorder %v1334, 8.507059e+37
        %v1336 = vand.u32 %v1322, 2147483648
        %v1337 = vor.u32 1.1754944e-38, %v1336
        %v1338 = vsel %vm1335, %v1337, %v1333
        %v1339 = vmul.f32 1.0, %v1338
        %v1340 = vrcp.pop %v1323
        %v1341 = vmul.f32 %v1323, %v1340
        %v1342 = vsub.f32 1.0, %v1341
        %v1343 = vmul.f32 %v1340, %v1342
        %v1344 = vadd.f32 %v1340, %v1343
        %vm1345 = vweird.f32 %v1323
        %vm1346 = vweird.f32 %v1340
        %vm1347 = vmor %vm1345, %vm1346
        %v1348 = vsel %vm1347, %v1340, %v1344
        %v1349 = vand.u32 2147483647, %v1323
        %vm1350 = vcmp.eq.f32.partialorder %v1349, 8.507059e+37
        %v1351 = vand.u32 %v1323, 2147483648
        %v1352 = vor.u32 1.1754944e-38, %v1351
        %v1353 = vsel %vm1350, %v1352, %v1348
        %v1354 = vmul.f32 1.0, %v1353
        %v1355 = vrcp.pop %v1324
        %v1356 = vmul.f32 %v1324, %v1355
        %v1357 = vsub.f32 1.0, %v1356
        %v1358 = vmul.f32 %v1355, %v1357
        %v1359 = vadd.f32 %v1355, %v1358
        %vm1360 = vweird.f32 %v1324
        %vm1361 = vweird.f32 %v1355
        %vm1362 = vmor %vm1360, %vm1361
        %v1363 = vsel %vm1362, %v1355, %v1359
        %v1364 = vand.u32 2147483647, %v1324
        %vm1365 = vcmp.eq.f32.partialorder %v1364, 8.507059e+37
        %v1366 = vand.u32 %v1324, 2147483648
        %v1367 = vor.u32 1.1754944e-38, %v1366
        %v1368 = vsel %vm1365, %v1367, %v1363
        %v1369 = vmul.f32 1.0, %v1368
        %1370 = vst [vmem:[%s409] sm:$0xff] %v1339
        %1371 = vst [vmem:[%s409 + $0x8] sm:$0xff] %v1354
        %1372 = vst [vmem:[%s409 + $0x10] sm:$0xff] %v1369
        %s1373 = sand.u32 %s173, 1
        %s1374 = scalar_lea.sflag [#allocation7], %s1373
        %s1375 = sand.u32 %s173, 1
        %s1376 = smul.addr %s1375, 24
        %s1377 = scalar_lea.vmem [#allocation12], %s1376
        %s1378 = sand.u32 %s29, 1
        %s1379 = scalar_lea.sflag [#allocation14], %s1378
        %s1380 = sand.u32 %s201, 1
        %s1381 = smul.addr %s1380, 24
        %s1382 = scalar_lea.vmem [#allocation13], %s1381
        %s1383 = sand.u32 %s29, 1
        %s1384 = scalar_lea.sflag [#allocation14], %s1383
        %s1385 = sand.u32 %s227, 1
        %s1386 = smul.addr %s1385, 24
        %s1387 = scalar_lea.vmem [#allocation15], %s1386
        // Predicated region
        $region61: #{call.1} parent=39 // pred_check
          %p1388 = pneg %p183
        $region62: #{call.1} parent=39 // pred_check_branch
          %1390 = sbr.rel (%p1388) target = $region64
        $region63: #{call.1} parent=39 // pred_region
          %1392 = vsyncadd %s1374, 0
          %s1393 = smul.addr %s33, 3
          %s1394 = smul.addr %s34, 6
          %s1395 = sadd.s32 %s1393, %s1394
          %s1396 = smul.addr %s1395, 8
          %s1397 = scalar_lea.hbm %s5, %s1396
          %s1399 = sshll.u32 %s1377, 4
          %s1400 = int_to_ptr.vmem [resolvable:$true] %s1399
          %s1401 = sshll.u32 %s1397, 4
          %s1402 = int_to_ptr.hbm [resolvable:$true] %s1401
          %1404 = dma.vmem_to_hbm [thread:$0]  %s1400, 384, %s1402, %s1374
        $region64: #{call.1} parent=39 // pred_fallthru
          _
        // Predicated region
        $region65: #{call.1} parent=39 // pred_check
          %p1405 = pneg %p211
        $region66: #{call.1} parent=39 // pred_check_branch
          %1407 = sbr.rel (%p1405) target = $region68
        $region67: #{call.1} parent=39 // pred_region
          %1409 = vsyncadd %s1379, 0
          %s1410 = smul.addr %s33, 3
          %s1411 = smul.addr %s34, 6
          %s1412 = sadd.s32 %s1410, %s1411
          %s1413 = smul.addr %s1412, 8
          %s1414 = scalar_lea.hbm %s6, %s1413
          %s1416 = sshll.u32 %s1382, 4
          %s1417 = int_to_ptr.vmem [resolvable:$true] %s1416
          %s1418 = sshll.u32 %s1414, 4
          %s1419 = int_to_ptr.hbm [resolvable:$true] %s1418
          %1421 = dma.vmem_to_hbm [thread:$0]  %s1417, 384, %s1419, %s1379
        $region68: #{call.1} parent=39 // pred_fallthru
          _
        // Predicated region
        $region69: #{call.1} parent=39 // pred_check
          %p1422 = pneg %p237
        $region70: #{call.1} parent=39 // pred_check_branch
          %1424 = sbr.rel (%p1422) target = $region72
        $region71: #{call.1} parent=39 // pred_region
          %1426 = vsyncadd %s1384, 0
          %s1427 = smul.addr %s33, 3
          %s1428 = smul.addr %s1427, 8
          %s1429 = scalar_lea.hbm %s7, %s1428
          %s1431 = sshll.u32 %s1387, 4
          %s1432 = int_to_ptr.vmem [resolvable:$true] %s1431
          %s1433 = sshll.u32 %s1429, 4
          %s1434 = int_to_ptr.hbm [resolvable:$true] %s1433
          %1436 = dma.vmem_to_hbm [thread:$0]  %s1432, 384, %s1434, %s1384
        $region72: #{call.1} parent=39 // pred_fallthru
          _
      $region40: #{call.1} parent=5 // pred_fallthru
        _
      %p1437 = scmp.le.s32.totalorder 2, %s24
      // Predicated region
      $region73: #{call.1} parent=5 // pred_check
        %p1438 = pneg %p1437
      $region74: #{call.1} parent=5 // pred_check_branch
        %1440 = sbr.rel (%p1438) target = $region76
      $region75: #{call.1} parent=5 // pred_region
        %s1441 = ssub.s32 %s24, 2
        // Predicated region
        $region77: #{call.1} parent=75 // pred_check
          %p1442 = pneg %p189
        $region78: #{call.1} parent=75 // pred_check_branch
          %1444 = sbr.rel (%p1442) target = $region80
        $region79: #{call.1} parent=75 // pred_region
          %s1445 = sand.u32 %s174, 1
          %s1446 = scalar_lea.sflag [#allocation7], %s1445
          %s1447 = sand.u32 %s174, 1
          %s1448 = smul.addr %s1447, 24
          %s1449 = scalar_lea.vmem [#allocation12], %s1448
          %1451 = dma.done %s1446, 384
        $region80: #{call.1} parent=75 // pred_fallthru
          _
        // Predicated region
        $region81: #{call.1} parent=75 // pred_check
          %p1452 = pneg %p217
        $region82: #{call.1} parent=75 // pred_check_branch
          %1454 = sbr.rel (%p1452) target = $region84
        $region83: #{call.1} parent=75 // pred_region
          %s1455 = sand.u32 %s30, 1
          %s1456 = scalar_lea.sflag [#allocation14], %s1455
          %s1457 = sand.u32 %s202, 1
          %s1458 = smul.addr %s1457, 24
          %s1459 = scalar_lea.vmem [#allocation13], %s1458
          %1461 = dma.done %s1456, 384
        $region84: #{call.1} parent=75 // pred_fallthru
          _
        // Predicated region
        $region85: #{call.1} parent=75 // pred_check
          %p1462 = pneg %p243
        $region86: #{call.1} parent=75 // pred_check_branch
          %1464 = sbr.rel (%p1462) target = $region88
        $region87: #{call.1} parent=75 // pred_region
          %s1465 = sand.u32 %s30, 1
          %s1466 = scalar_lea.sflag [#allocation14], %s1465
          %s1467 = sand.u32 %s228, 1
          %s1468 = smul.addr %s1467, 24
          %s1469 = scalar_lea.vmem [#allocation15], %s1468
          %1471 = dma.done %s1466, 384
        $region88: #{call.1} parent=75 // pred_fallthru
          _
      $region76: #{call.1} parent=5 // pred_fallthru
        _
    $region6: #{call.1} parent=1 // loop_footer
      %s28 = sadd.s32 1, %s24
    $region7: #{call.1} parent=1 // loop_footer_branch
      %23 = sbr.rel target = $region3
    $region8: #{call.1} parent=1 // loop_exit
      _
    %1472 = vsyncpa [#allocation6], 1
    %s1473 = scalar_lea.sflag [#allocation6], 1
    %1474 = vsyncpa %s1473, 1
    %1475 = vsyncpa [#allocation9], 1
    %1476 = vsyncpa [#allocation7], 1
    %s1477 = scalar_lea.sflag [#allocation7], 1
    %1478 = vsyncpa %s1477, 1
    %1479 = vsyncpa [#allocation14], 1
    %s1480 = scalar_lea.sflag [#allocation14], 1
    %1481 = vsyncpa %s1480, 1

</llo_original>
